<compile_context>
chip_gen: v7x
topology: tpu7x:2x2x1
jax: 0.10.0
libtpu: 0.0.40
codegen_flags: <defaults>
</compile_context>

<pallas_src>
import functools

import jax
import jax.numpy as jnp
from jax import lax
from jax.experimental import pallas as pl
from jax.experimental.pallas import tpu as pltpu

# ----------------------------------------------------------------------------------
# Synthetic stand-ins for project-level constants / dependencies (not provided).
# ----------------------------------------------------------------------------------
class joint_set:
    n_leaf = 5
    n_full = 22
    reduced = (1, 2, 3, 4, 5, 6, 9, 10, 11, 12, 13, 14, 16, 17, 18, 19)
    n_reduced = 16


IMU_JOINTS_POS = (20, 21, 7, 8, 15, 0)
IMU_JOINTS_ROT = (20, 21, 7, 8, 15, 0)
FRAME_RATE = 60.0
NUM_JOINTS = 22
SMPL_PARENTS = (-1, 0, 0, 0, 1, 2, 3, 4, 5, 6, 7, 8, 9, 9, 9, 12, 13, 14, 16, 17, 18, 19)


def lerp(val, low, high):
    """linear interpolation (argument order exactly as in the reference code)"""
    return low + (high - low) * val


# ----------------------------------------------------------------------------------
# Rotation utilities (plain JAX glue)
# ----------------------------------------------------------------------------------
def rotation_6d_to_matrix(d6):
    a1, a2 = d6[..., :3], d6[..., 3:6]
    b1 = a1 / jnp.maximum(jnp.linalg.norm(a1, axis=-1, keepdims=True), 1e-8)
    a2p = a2 - jnp.sum(b1 * a2, axis=-1, keepdims=True) * b1
    b2 = a2p / jnp.maximum(jnp.linalg.norm(a2p, axis=-1, keepdims=True), 1e-8)
    b3 = jnp.cross(b1, b2)
    return jnp.stack([b1, b2, b3], axis=-2)


def matrix_to_rotation_6d(R):
    return R[..., :2, :].reshape(R.shape[:-2] + (6,))


def matrix_to_axis_angle(R):
    # TODO(synk): near-pi rotations use the atan2 form (differs slightly from pytorch3d's quaternion path)
    v = jnp.stack([R[..., 2, 1] - R[..., 1, 2],
                   R[..., 0, 2] - R[..., 2, 0],
                   R[..., 1, 0] - R[..., 0, 1]], axis=-1)
    s = jnp.linalg.norm(v, axis=-1)                              # 2 sin(theta)
    c = R[..., 0, 0] + R[..., 1, 1] + R[..., 2, 2] - 1.0         # 2 cos(theta)
    angle = jnp.arctan2(s, c)
    scale = jnp.where(s > 1e-6, angle / jnp.maximum(s, 1e-12), 0.5)
    return v * scale[..., None]


def axis_angle_to_matrix(aa):
    angle = jnp.linalg.norm(aa, axis=-1, keepdims=True)
    axis = aa / jnp.maximum(angle, 1e-8)
    x, y, z = axis[..., 0], axis[..., 1], axis[..., 2]
    zero = jnp.zeros_like(x)
    K = jnp.stack([zero, -z, y, z, zero, -x, -y, x, zero], axis=-1)
    K = K.reshape(aa.shape[:-1] + (3, 3))
    eye = jnp.eye(3, dtype=aa.dtype)
    s = jnp.sin(angle)[..., None]
    cc = (1.0 - jnp.cos(angle))[..., None]
    return eye + s * K + cc * (K @ K)


def global2local(R_global, parents):
    # R_global: [N, J, 3, 3]; local[j] = R_global[parent[j]]^T @ R_global[j]; local[0] = R_global[0]
    locals_ = [R_global[:, 0]]
    for j in range(1, R_global.shape[1]):
        p = parents[j]
        locals_.append(jnp.einsum('nia,nib->nab', R_global[:, p], R_global[:, j]))
    return jnp.stack(locals_, axis=1)


# ----------------------------------------------------------------------------------
# Synthetic body model (the real SMPL BodyModel needs an external asset file).
# ----------------------------------------------------------------------------------
class SyntheticBodyModel:
    """Deterministic 22-joint FK skeleton standing in for the SMPL BodyModel."""

    def __init__(self, key):
        self.rest = 0.25 * jax.random.normal(key, (NUM_JOINTS, 3), jnp.float32)
        self.parents = SMPL_PARENTS

    def __call__(self, root_orient, pose_body, trans=None):
        n = root_orient.shape[0]
        aa = jnp.concatenate([root_orient, pose_body], axis=-1).reshape(n, NUM_JOINTS, 3)
        R_local = axis_angle_to_matrix(aa)                       # [N, 22, 3, 3]
        R_g = [R_local[:, 0]]
        J = [jnp.broadcast_to(self.rest[0], (n, 3))]
        for j in range(1, NUM_JOINTS):
            p = self.parents[j]
            R_g.append(jnp.einsum('nij,njk->nik', R_g[p], R_local[:, j]))
            off = self.rest[j] - self.rest[p]
            J.append(J[p] + jnp.einsum('nij,j->ni', R_g[p], off))
        Jtr = jnp.stack(J, axis=1)                               # [N, 22, 3]
        if trans is not None:
            Jtr = Jtr + trans[:, None, :]
        return Jtr


# ----------------------------------------------------------------------------------
# Pallas kernels
# ----------------------------------------------------------------------------------
def _linear_kernel(x_ref, wt_ref, b_ref, o_ref):
    y = jnp.dot(x_ref[...].astype(jnp.bfloat16), wt_ref[...],
                preferred_element_type=jnp.float32) + b_ref[...]
    o_ref[...] = y


def pallas_linear(x, w_t, b):
    """y = x @ w_t + b.  x: [M, K] f32; w_t: [K, N] bf16 pre-transposed; b: [1, N] f32."""
    m = x.shape[0]
    n = w_t.shape[1]
    return pl.pallas_call(
        _linear_kernel,
        out_shape=jax.ShapeDtypeStruct((m, n), jnp.float32),
    )(x, w_t, b)


def _fused_rnn_kernel(x_ref, w1_ref, b1_ref,
                      wih0_ref, whh0_ref, bg0_ref,
                      wih1_ref, whh1_ref, bg1_ref,
                      h0_ref, c0_ref,
                      w2_ref, b2_ref,
                      out_ref,
                      gx_ref, cur_ref,
                      *, hidden, seq, num_dirs):
    """Whole RNN net in one kernel: Linear+ReLU -> 2 (bi)LSTM layers -> Linear.

    x_ref:   [S, B, n_in]  f32, time-major
    w1_ref:  [n_in, H]     bf16        b1_ref:  [1, H]      f32
    wihL:    [in_L, D*4H]  bf16        bgL:     [1, D*4H]   f32 (bih+bhh)
    whhL:    [D*H, D*4H]   bf16 block-diagonal recurrent weights
    h0/c0:   [L*D, B, H]   f32 (PyTorch layer-major ordering)
    w2_ref:  [D*H, n_out]  bf16        b2_ref:  [1, n_out]  f32
    out_ref: [S, B, n_out] f32
    gx_ref:  [S, B, D*4H]  f32 scratch (input-side gates, reused per layer)
    cur_ref: [S, B, D*H]   f32 scratch (per-layer hidden sequence, reused)
    Gate column order per direction is (i, f, o, g): sigmoid gates contiguous, tanh last.
    """
    H = hidden
    D = num_dirs
    unroll = seq <= 16

    def bf(v):
        return v.astype(jnp.bfloat16)

    def sigm(v):
        # sigmoid as one EUP tanh pass instead of exp + reciprocal
        return 0.5 * (jnp.tanh(0.5 * v) + 1.0)

    # ---- layer 0 input projection: fuse input Linear+ReLU with x @ Wih0 ----------
    def proj0(t, carry):
        x1 = jnp.maximum(
            jnp.dot(bf(x_ref[t]), w1_ref[...],
                    preferred_element_type=jnp.float32) + b1_ref[...], 0.0)
        gx_ref[t] = jnp.dot(bf(x1), wih0_ref[...],
                            preferred_element_type=jnp.float32) + bg0_ref[...]
        return carry

    lax.fori_loop(0, seq, proj0, 0, unroll=unroll)

    # ---- one LSTM layer recurrence (both directions fused into one matmul) -------
    def run_layer(layer_idx, whh_ref):
        whh = whh_ref[...]                       # VMEM-resident bf16 [D*H, D*4H]

        if D == 1:
            def body(t, carry):
                h, c = carry
                gates = gx_ref[t] + jnp.dot(bf(h), whh,
                                            preferred_element_type=jnp.float32)
                sg = sigm(gates[:, 0:3 * H])
                i = sg[:, 0:H]
                f = sg[:, H:2 * H]
                o = sg[:, 2 * H:3 * H]
                g = jnp.tanh(gates[:, 3 * H:4 * H])
                c = f * c + i * g
                h = o * jnp.tanh(c)
                cur_ref[t] = h
                return (h, c)

            lax.fori_loop(0, seq, body,
                          (h0_ref[layer_idx], c0_ref[layer_idx]), unroll=unroll)
        else:
            def body(t, carry):
                h_f, c_f, h_b, c_b = carry
                tb = seq - 1 - t
                gx_cat = jnp.concatenate(
                    [gx_ref[t, :, 0:4 * H], gx_ref[tb, :, 4 * H:8 * H]], axis=-1)
                h_cat = jnp.concatenate([h_f, h_b], axis=-1)
                gates = gx_cat + jnp.dot(bf(h_cat), whh,
                                         preferred_element_type=jnp.float32)
                sf = sigm(gates[:, 0:3 * H])
                i_f = sf[:, 0:H]
                f_f = sf[:, H:2 * H]
                o_f = sf[:, 2 * H:3 * H]
                g_f = jnp.tanh(gates[:, 3 * H:4 * H])
                sb = sigm(gates[:, 4 * H:7 * H])
                i_b = sb[:, 0:H]
                f_b = sb[:, H:2 * H]
                o_b = sb[:, 2 * H:3 * H]
                g_b = jnp.tanh(gates[:, 7 * H:8 * H])
                c_f = f_f * c_f + i_f * g_f
                h_f = o_f * jnp.tanh(c_f)
                c_b = f_b * c_b + i_b * g_b
                h_b = o_b * jnp.tanh(c_b)
                cur_ref[t, :, 0:H] = h_f
                cur_ref[tb, :, H:2 * H] = h_b
                return (h_f, c_f, h_b, c_b)

            lax.fori_loop(0, seq, body,
                          (h0_ref[2 * layer_idx], c0_ref[2 * layer_idx],
                           h0_ref[2 * layer_idx + 1], c0_ref[2 * layer_idx + 1]),
                          unroll=unroll)

    run_layer(0, whh0_ref)

    # ---- layer 1 input projection (reads layer-0 hidden seq, reuses gx scratch) --
    def proj1(t, carry):
        gx_ref[t] = jnp.dot(bf(cur_ref[t]), wih1_ref[...],
                            preferred_element_type=jnp.float32) + bg1_ref[...]
        return carry

    lax.fori_loop(0, seq, proj1, 0, unroll=unroll)

    run_layer(1, whh1_ref)          # overwrites cur_ref with layer-1 hidden seq

    # ---- output linear ------------------------------------------------------------
    def out_body(t, carry):
        out_ref[t] = jnp.dot(bf(cur_ref[t]), w2_ref[...],
                             preferred_element_type=jnp.float32) + b2_ref[...]
        return carry

    lax.fori_loop(0, seq, out_body, 0, unroll=unroll)


def pallas_fused_rnn(x_tm, p, h0, c0):
    """Run one whole RNN net in a single pallas_call.

    x_tm: [S, B, n_in] f32 time-major; h0/c0: [L*D, B, H] f32  ->  [S, B, n_out] f32.
    Single-block kernel (all weights + activations VMEM-resident); largest net is
    ~7 MB of bf16 weights + <1 MB scratch, well inside VMEM on v5e/v6e/v7x.
    For long sequences, tile S with a grid and carry h/c in scratch (TODO if needed).
    """
    s, b, _ = x_tm.shape
    H, D, n_out = p['n_hidden'], p['D'], p['n_output']
    kernel = functools.partial(_fused_rnn_kernel, hidden=H, seq=s, num_dirs=D)
    return pl.pallas_call(
        kernel,
        out_shape=jax.ShapeDtypeStruct((s, b, n_out), jnp.float32),
        scratch_shapes=[pltpu.VMEM((s, b, D * 4 * H), jnp.float32),
                        pltpu.VMEM((s, b, D * H), jnp.float32)],
        compiler_params=pltpu.CompilerParams(vmem_limit_bytes=32 * 1024 * 1024),
    )(x_tm, p['W1_t'], p['b1'],
      p['wih_t'][0], p['whh_bd'][0], p['bias'][0],
      p['wih_t'][1], p['whh_bd'][1], p['bias'][1],
      h0, c0, p['W2_t'], p['b2'])


# ----------------------------------------------------------------------------------
# Parameter initialization (deterministic, synthetic).  Weights are stored in exactly
# the layout/dtype the kernels consume (bf16, pre-transposed, direction-concatenated,
# block-diagonal Whh, biases folded, gate order (i,f,o,g)) so the forward pass issues
# zero weight transposes / casts.
# ----------------------------------------------------------------------------------
def init_linear_params(key, out_dim, in_dim, scale=0.1):
    kw, kb = jax.random.split(key)
    return (scale * jax.random.normal(kw, (out_dim, in_dim), jnp.float32),
            scale * jax.random.normal(kb, (out_dim,), jnp.float32))


def init_rnn_params(key, n_input, n_output, n_hidden, bidirectional, num_layers=2, scale=0.1):
    ndir = 2 if bidirectional else 1
    H = n_hidden
    keys = jax.random.split(key, 2 + num_layers * ndir)
    W1, b1 = init_linear_params(keys[0], H, n_input, scale)
    W2, b2 = init_linear_params(keys[1], n_output, H * ndir, scale)
    wih_t, whh_bd, bias = [], [], []
    for layer in range(num_layers):
        in_sz = H if layer == 0 else H * ndir
        w_cols, b_cols, whh_dirs = [], [], []
        for d in range(ndir):
            k1, k2, k3, k4 = jax.random.split(keys[2 + layer * ndir + d], 4)
            # gate column order (i, f, o, g): sigmoid gates contiguous, tanh gate last
            wih = scale * jax.random.normal(k1, (4 * H, in_sz), jnp.float32)
            whh = scale * jax.random.normal(k2, (4 * H, H), jnp.float32)
            bih = scale * jax.random.normal(k3, (4 * H,), jnp.float32)
            bhh = scale * jax.random.normal(k4, (4 * H,), jnp.float32)
            w_cols.append(jnp.transpose(wih))                    # [in, 4H]
            whh_dirs.append(jnp.transpose(whh))                  # [H, 4H]
            b_cols.append(bih + bhh)                             # [4H]
        wih_t.append(jnp.concatenate(w_cols, axis=1).astype(jnp.bfloat16))     # [in, D*4H]
        if ndir == 1:
            bd = whh_dirs[0]                                     # [H, 4H]
        else:                                                    # block-diag [2H, 8H]
            z = jnp.zeros((H, 4 * H), jnp.float32)
            bd = jnp.concatenate(
                [jnp.concatenate([whh_dirs[0], z], axis=1),
                 jnp.concatenate([z, whh_dirs[1]], axis=1)], axis=0)
        whh_bd.append(bd.astype(jnp.bfloat16))
        bias.append(jnp.concatenate(b_cols, axis=0).reshape(1, -1))            # [1, D*4H] f32
    return dict(W1_t=jnp.transpose(W1).astype(jnp.bfloat16), b1=b1.reshape(1, -1),
                W2_t=jnp.transpose(W2).astype(jnp.bfloat16), b2=b2.reshape(1, -1),
                wih_t=wih_t, whh_bd=whh_bd, bias=bias,
                n_hidden=H, D=ndir, L=num_layers, n_output=n_output)


# ----------------------------------------------------------------------------------
# HumanPoseModule (JAX / Pallas)
# ----------------------------------------------------------------------------------
class HumanPoseModuleJax:
    def __init__(self, key):
        self.num_human_imus = 6
        self.imu_dim = 9
        self.joint_dim = 6
        self.num_joints = NUM_JOINTS
        n_human_imu = self.num_human_imus * self.imu_dim
        ks = jax.random.split(key, 11)
        self.pose_s1 = init_rnn_params(ks[0], n_human_imu + joint_set.n_leaf * 3,
                                       joint_set.n_leaf * 3, 256, True)
        self.pose_s2 = init_rnn_params(ks[1], joint_set.n_leaf * 3 + n_human_imu,
                                       joint_set.n_full * 3, 64, True)
        self.pose_s3 = init_rnn_params(ks[2], joint_set.n_full * 3 + n_human_imu,
                                       joint_set.n_reduced * 6, 128, True)
        self.contact_prob_net = init_rnn_params(ks[3], joint_set.n_leaf * 3 + n_human_imu,
                                                2, 64, True)
        self.trans_b2 = init_rnn_params(ks[4], joint_set.n_full * 3 + n_human_imu,
                                        3, 256, False)
        self.initial_state_dim = 64

        # The five initial-state projections all consume the same [B, 64] vector, so
        # their weight matrices are concatenated along the output dim once at init and
        # run as ONE pallas_linear per forward.
        self.rnn_nets = [self.pose_s1, self.pose_s2, self.pose_s3,
                         self.contact_prob_net, self.trans_b2]
        proj_Ws, proj_bs, offsets = [], [], [0]
        for i, p in enumerate(self.rnn_nets):
            out_dim = 2 * p['L'] * p['D'] * p['n_hidden']
            W, b = init_linear_params(ks[5 + i], out_dim, self.initial_state_dim)
            proj_Ws.append(W)
            proj_bs.append(b)
            offsets.append(offsets[-1] + out_dim)
        self.proj_W_t = jnp.transpose(
            jnp.concatenate(proj_Ws, axis=0)).astype(jnp.bfloat16)            # [64, total]
        self.proj_b = jnp.concatenate(proj_bs, axis=0).reshape(1, -1)         # [1, total]
        self.proj_offsets = offsets

        self.body_model = SyntheticBodyModel(ks[10])
        self.parents = SMPL_PARENTS
        self.gravity_velocity = jnp.array([0.0, 0.0, -0.018], jnp.float32)
        self.vel_scale = 1.66
        self.prob_threshold_min = 0.5
        self.prob_threshold_max = 0.9
        self.floor_y = 0.0
        self.left_foot_idx, self.right_foot_idx = 7, 8
        self.wrist_l_idx, self.wrist_r_idx = 20, 21

    # --- helpers -------------------------------------------------------------------
    def _reduced_global_to_local_6d(self, imu_rotation_6d, reduced_pose_6d):
        bs_seq = reduced_pose_6d.shape[0]
        R_imu = rotation_6d_to_matrix(imu_rotation_6d)                       # [N, 6, 3, 3]
        R_reduced = rotation_6d_to_matrix(
            reduced_pose_6d.reshape(bs_seq, joint_set.n_reduced, 6))
        eye = jnp.broadcast_to(jnp.eye(3, dtype=jnp.float32),
                               (bs_seq, self.num_joints, 3, 3))
        R_global = eye.at[:, jnp.array(joint_set.reduced)].set(R_reduced)
        R_global = R_global.at[:, jnp.array(IMU_JOINTS_ROT)].set(R_imu)
        local_rotmats = global2local(R_global, self.parents)
        local_rotmats = local_rotmats.at[:, 0].set(R_imu[:, -1])
        local_rotmats = local_rotmats.at[:, jnp.array([20, 21, 7, 8])].set(
            jnp.broadcast_to(jnp.eye(3, dtype=jnp.float32), (bs_seq, 4, 3, 3)))
        return matrix_to_rotation_6d(local_rotmats.reshape(-1, 3, 3)).reshape(
            bs_seq, self.num_joints * 6)

    def _prob_to_weight(self, p):
        tmin, tmax = float(self.prob_threshold_min), float(self.prob_threshold_max)
        if tmin >= tmax:
            return jnp.full_like(p, 0.5)[:, None]
        w = (jnp.clip(p, tmin, tmax) - tmin) / (tmax - tmin)
        return w[:, None]

    # --- forward -------------------------------------------------------------------
    def forward(self, human_imu_data, pred_leaf_vel_flat, compressed_initial_state):
        bsz, seq, _ = human_imu_data.shape
        n = bsz * seq

        # One fused projection of the compressed initial state for all 5 RNNs.
        all_proj = pallas_linear(compressed_initial_state, self.proj_W_t, self.proj_b)

        def get_initial_rnn_state(net_idx, rnn_p):
            L, D, H = rnn_p['L'], rnn_p['D'], rnn_p['n_hidden']
            lo, hi = self.proj_offsets[net_idx], self.proj_offsets[net_idx + 1]
            projected = all_proj[:, lo:hi].reshape(bsz, 2 * L * D, H)
            h0 = jnp.transpose(projected[:, :L * D], (1, 0, 2))             # [L*D, B, H]
            c0 = jnp.transpose(projected[:, L * D:], (1, 0, 2))
            return h0, c0

        s1_state = get_initial_rnn_state(0, self.pose_s1)
        s2_state = get_initial_rnn_state(1, self.pose_s2)
        s3_state = get_initial_rnn_state(2, self.pose_s3)
        contact_state = get_initial_rnn_state(3, self.contact_prob_net)
        trans_state = get_initial_rnn_state(4, self.trans_b2)

        # Time-major activations through the whole RNN stack; only the small per-net
        # outputs (<=96 lanes) get transposed back to batch-major for downstream use.
        human_imu_tm = jnp.transpose(human_imu_data, (1, 0, 2))              # [S, B, 54]
        leaf_vel_tm = jnp.transpose(pred_leaf_vel_flat, (1, 0, 2))           # [S, B, 15]

        s1_in_tm = jnp.concatenate([human_imu_tm, leaf_vel_tm], axis=2)
        s1_out_tm = pallas_fused_rnn(s1_in_tm, self.pose_s1, *s1_state)      # [S, B, 15]
        s1_output = jnp.transpose(s1_out_tm, (1, 0, 2))
        pred_leaf_pos = s1_output.reshape(bsz, seq, joint_set.n_leaf, 3)

        s2_in_tm = jnp.concatenate([s1_out_tm, human_imu_tm], axis=2)
        s2_out_tm = pallas_fused_rnn(s2_in_tm, self.pose_s2, *s2_state)      # [S, B, 66]
        s2_output = jnp.transpose(s2_out_tm, (1, 0, 2))
        pred_full_pos = s2_output.reshape(bsz, seq, joint_set.n_full, 3)

        s3_in_tm = jnp.concatenate([s2_out_tm, human_imu_tm], axis=2)
        s3_out_tm = pallas_fused_rnn(s3_in_tm, self.pose_s3, *s3_state)      # [S, B, 96]
        s3_output = jnp.transpose(s3_out_tm, (1, 0, 2))

        human_imu_flat = human_imu_data.reshape(-1, self.num_human_imus, self.imu_dim)
        human_imu_rot_flat = human_imu_flat[:, :, 3:9]
        pred_motion_6d_flat = self._reduced_global_to_local_6d(
            human_imu_rot_flat, s3_output.reshape(-1, joint_set.n_reduced * 6))
        pred_motion = pred_motion_6d_flat.reshape(bsz, seq, -1)

        # TODO(synk): on v7x the contact / trans_b2 branches are independent of pose_s3
        # and could be placed on the second TensorCore via pl.core_map.
        contact_in_tm = jnp.concatenate([s1_out_tm, human_imu_tm], axis=2)
        contact_probability = jax.nn.sigmoid(jnp.transpose(
            pallas_fused_rnn(contact_in_tm, self.contact_prob_net, *contact_state),
            (1, 0, 2)))
        contact_probability_flat = contact_probability.reshape(-1, 2)

        trans_in_tm = jnp.concatenate([s2_out_tm, human_imu_tm], axis=2)
        velocity_b2 = jnp.transpose(
            pallas_fused_rnn(trans_in_tm, self.trans_b2, *trans_state), (1, 0, 2))
        velocity_b2_flat = velocity_b2.reshape(-1, 3)

        pose_mat_flat = rotation_6d_to_matrix(pred_motion_6d_flat.reshape(-1, 22, 6))
        root_orient_mat_flat = pose_mat_flat[:, 0]
        pose_axis_angle_flat = matrix_to_axis_angle(pose_mat_flat).reshape(n, -1)
        j_flat = self.body_model(pose_axis_angle_flat[:, :3], pose_axis_angle_flat[:, 3:])
        j_seq = j_flat[:, :self.num_joints, :].reshape(bsz, seq, self.num_joints, 3)

        left_foot_pos = j_seq[:, :, self.left_foot_idx, :]
        right_foot_pos = j_seq[:, :, self.right_foot_idx, :]
        prev_left = jnp.roll(left_foot_pos, 1, axis=1).at[:, 0, :].set(left_foot_pos[:, 0, :])
        prev_right = jnp.roll(right_foot_pos, 1, axis=1).at[:, 0, :].set(right_foot_pos[:, 0, :])
        lfoot_vel_flat = (prev_left - left_foot_pos).reshape(-1, 3)
        rfoot_vel_flat = (prev_right - right_foot_pos).reshape(-1, 3)

        contact_indices = jnp.argmax(contact_probability_flat, axis=1)
        chosen_foot_vel = jnp.where(contact_indices[:, None] == 0,
                                    rfoot_vel_flat, lfoot_vel_flat)
        tran_b1_vel = self.gravity_velocity[None, :] + chosen_foot_vel

        velocity_b2_flat = jnp.einsum('nij,nj->ni', root_orient_mat_flat, velocity_b2_flat)
        tran_b2_vel = velocity_b2_flat * self.vel_scale / FRAME_RATE

        max_contact_prob = jnp.max(contact_probability_flat, axis=1)
        weight = self._prob_to_weight(max_contact_prob)
        velocity_flat = lerp(tran_b2_vel, tran_b1_vel, weight)
        velocity = velocity_flat.reshape(bsz, seq, 3)
        trans = jnp.cumsum(velocity, axis=1)

        pred_root_orient_6d = pred_motion[:, :, :6]
        pred_body_pose_6d = pred_motion[:, :, 6:]
        pred_root_orient_mat_flat = rotation_6d_to_matrix(pred_root_orient_6d.reshape(-1, 6))
        pred_body_pose_mat_flat = rotation_6d_to_matrix(
            pred_body_pose_6d.reshape(-1, 6)).reshape(-1, 21, 3, 3)
        pred_root_orient_axis_flat = matrix_to_axis_angle(pred_root_orient_mat_flat)
        pred_body_pose_axis_flat = matrix_to_axis_angle(
            pred_body_pose_mat_flat.reshape(-1, 3, 3)).reshape(-1, 21 * 3)
        pred_transl_flat = trans.reshape(-1, 3)
        pred_joints_all = self.body_model(pred_root_orient_axis_flat,
                                          pred_body_pose_axis_flat,
                                          trans=pred_transl_flat).reshape(bsz, seq, -1, 3)
        lhand_pos_global = pred_joints_all[:, :, self.wrist_l_idx, :]
        rhand_pos_global = pred_joints_all[:, :, self.wrist_r_idx, :]
        hand_positions = jnp.stack([lhand_pos_global, rhand_pos_global], axis=2)

        return {
            'pred_leaf_pos': pred_leaf_pos,
            'pred_full_pos': pred_full_pos,
            'motion': pred_motion,
            'tran_b2_vel': velocity_b2_flat.reshape(bsz, seq, 3),
            'contact_probability': contact_probability,
            'root_vel': velocity * FRAME_RATE,
            'root_pos': trans,
            'pred_hand_pos': hand_positions,
            'hands_pos_feat': jnp.concatenate([lhand_pos_global, rhand_pos_global], axis=2),
        }


# ----------------------------------------------------------------------------------
if __name__ == "__main__":
    key = jax.random.PRNGKey(0)
    k_mod, k_imu, k_vel, k_state = jax.random.split(key, 4)

    B, S = 2, 8
    n_human_imu = 6 * 9                      # 54
    module = HumanPoseModuleJax(k_mod)

    human_imu = 0.5 * jax.random.normal(k_imu, (B, S, n_human_imu), jnp.float32)
    leaf_vel = 0.5 * jax.random.normal(k_vel, (B, S, joint_set.n_leaf * 3), jnp.float32)
    compressed = 0.5 * jax.random.normal(k_state, (B, 64), jnp.float32)

    out = module.forward(human_imu, leaf_vel, compressed)
    jax.block_until_ready(out)

    # sanity on key output shapes
    assert out['motion'].shape == (B, S, NUM_JOINTS * 6)
    assert out['pred_leaf_pos'].shape == (B, S, joint_set.n_leaf, 3)
    assert out['pred_full_pos'].shape == (B, S, joint_set.n_full, 3)
    assert out['contact_probability'].shape == (B, S, 2)
    assert out['root_pos'].shape == (B, S, 3)
    assert out['pred_hand_pos'].shape == (B, S, 2, 3)

    print("KERNEL_OK")
</pallas_src>

<mosaic_0001>
module attributes {stable_mosaic.version = 11 : i64} {
  func.func @_linear_kernel(%arg0: memref<2x64xf32, #tpu.memory_space<vmem>>, %arg1: memref<64x5120xbf16, #tpu.memory_space<vmem>>, %arg2: memref<1x5120xf32, #tpu.memory_space<vmem>>, %arg3: memref<2x5120xf32, #tpu.memory_space<vmem>>) attributes {dimension_semantics = [], scalar_prefetch = 0 : i64, scratch_operands = 0 : i64, tpu.core_type = #tpu.core_type<tc>} {
    %c0 = arith.constant 0 : index
    %c0_0 = arith.constant 0 : index
    %0 = vector.load %arg0[%c0, %c0_0] : memref<2x64xf32, #tpu.memory_space<vmem>>, vector<2x64xf32>
    %1 = arith.truncf %0 : vector<2x64xf32> to vector<2x64xbf16>
    %c0_1 = arith.constant 0 : index
    %c0_2 = arith.constant 0 : index
    %2 = vector.load %arg1[%c0_1, %c0_2] : memref<64x5120xbf16, #tpu.memory_space<vmem>>, vector<64x5120xbf16>
    %cst = arith.constant dense<0.000000e+00> : vector<2x5120xf32>
    %3 = tpu.matmul %1, %2, %cst {dimension_numbers = #tpu.dot_dimension_numbers<[1], [0], [0], [1], [0, 0, 1, 1], [], []>} : vector<2x64xbf16>, vector<64x5120xbf16>, vector<2x5120xf32> -> vector<2x5120xf32>
    %c0_3 = arith.constant 0 : index
    %c0_4 = arith.constant 0 : index
    %4 = vector.load %arg2[%c0_3, %c0_4] : memref<1x5120xf32, #tpu.memory_space<vmem>>, vector<1x5120xf32>
    %5 = vector.broadcast %4 : vector<1x5120xf32> to vector<2x5120xf32>
    %6 = arith.addf %3, %5 : vector<2x5120xf32>
    %c0_5 = arith.constant 0 : index
    %c0_6 = arith.constant 0 : index
    %7 = vector.load %arg3[%c0_5, %c0_6] : memref<2x5120xf32, #tpu.memory_space<vmem>>, vector<2x5120xf32>
    tpu.vector_store %arg3[%c0_5, %c0_6], %6 {strides = array<i32>} : memref<2x5120xf32, #tpu.memory_space<vmem>>, vector<2x5120xf32>,
    return
  }
}

</mosaic_0001>

<llo_original>
// kernel: tpu_custom_call.1
$region0: #{tpu_custom_call.1}
  #allocation0 [shape = 'u32[]', space=smem, size = 0x4, offset = 0x4, fixed_abs, tag = 'smem constant byte address 0x4 - core index']
  #allocation1 [shape = 'u32[144,128]{1,0:T(1,128)}', space=vmem, size = 0x12000, scoped, tag = 'internal scratch']
  %s0 = inlined_call_operand.hbm [shape: f32[2,64], index: 0, kind: input, shape index: {}]
  %s1 = inlined_call_operand.hbm [shape: bf16[64,5120], index: 1, kind: input, shape index: {}]
  %s2 = inlined_call_operand.hbm [shape: f32[1,5120], index: 2, kind: input, shape index: {}]
  %s3 = inlined_call_operand.hbm [shape: f32[2,5120], index: 3, kind: output, shape index: {}]
  %s4 = sld [smem:[#allocation0]]
  $region34: #{tpu_custom_call.1} parent=0
    _
  %s6 = ssub.s32 1, %s4
  %s7 = scalar_select 0, %s6, %s4
  $region1: #{tpu_custom_call.1} parent=0
    #allocation2 [shape = 'u8[1024]{0}', space=vmem, size = 0x400, scoped, tag = 'input window, operand 0, single buffered']
    #allocation3 [shape = 's32[1]{0}', space=sflag, size = 0x4, scoped, tag = 'scoped memory for tpu_custom_call.1']
    #allocation4 [shape = 's32[1]{0}', space=sflag, size = 0x4, scoped, tag = 'scoped memory for tpu_custom_call.1']
    #allocation5 [shape = 'u8[655360]{0}', space=vmem, size = 0xa0000, scoped, tag = 'input window, operand 1, single buffered']
    #allocation6 [shape = 's32[1]{0}', space=sflag, size = 0x4, scoped, tag = 'scoped memory for tpu_custom_call.1']
    #allocation7 [shape = 'u8[20480]{0}', space=vmem, size = 0x5000, scoped, tag = 'input window, operand 2, single buffered']
    #allocation8 [shape = 'u8[40960]{0}', space=vmem, size = 0xa000, scoped, tag = 'output window, operand 0, single buffered']
    %8 = vsyncpa [#allocation3], 0
    %9 = vsyncpa [#allocation6], 0
    %10 = vsyncpa [#allocation4], 0
    // Predicated region
    $region2: #{tpu_custom_call.1} parent=1 // pred_check
      _
    $region3: #{tpu_custom_call.1} parent=1 // pred_check_branch
      %12 = sbr.rel (0) target = $region5
    $region4: #{tpu_custom_call.1} parent=1 // pred_region
      %s14 = ssub.s32 32, 32
      %15 = vsyncadd [#allocation3], %s14
      %s17 = sshll.u32 [#allocation2], 4
      %s18 = int_to_ptr.vmem [resolvable:$true] %s17
      %20 = dma.hbm_to_vmem [thread:$0]  %s0, 32, %s18, [#allocation3]
    $region5: #{tpu_custom_call.1} parent=1 // pred_fallthru
      _
    // Predicated region
    $region6: #{tpu_custom_call.1} parent=1 // pred_check
      _
    $region7: #{tpu_custom_call.1} parent=1 // pred_check_branch
      %22 = sbr.rel (0) target = $region9
    $region8: #{tpu_custom_call.1} parent=1 // pred_region
      %s24 = ssub.s32 20480, 20480
      %25 = vsyncadd [#allocation6], %s24
      %s26 = sshll.u32 [#allocation5], 4
      %s27 = int_to_ptr.vmem [resolvable:$true] %s26
      %32 = dma.hbm_to_vmem [thread:$0]  %s1, 20480, %s27, [#allocation6], 2560, 2560, 160
    $region9: #{tpu_custom_call.1} parent=1 // pred_fallthru
      _
    // Predicated region
    $region10: #{tpu_custom_call.1} parent=1 // pred_check
      _
    $region11: #{tpu_custom_call.1} parent=1 // pred_check_branch
      %34 = sbr.rel (0) target = $region13
    $region12: #{tpu_custom_call.1} parent=1 // pred_region
      %s36 = ssub.s32 640, 640
      %37 = vsyncadd [#allocation6], %s36
      %s39 = sshll.u32 [#allocation7], 4
      %s40 = int_to_ptr.vmem [resolvable:$true] %s39
      %42 = dma.hbm_to_vmem [thread:$0]  %s2, 640, %s40, [#allocation6]
    $region13: #{tpu_custom_call.1} parent=1 // pred_fallthru
      _
    // Predicated region
    $region14: #{tpu_custom_call.1} parent=1 // pred_check
      _
    $region15: #{tpu_custom_call.1} parent=1 // pred_check_branch
      %44 = sbr.rel (0) target = $region17
    $region16: #{tpu_custom_call.1} parent=1 // pred_region
      %45 = dma.done [#allocation3], 32
    $region17: #{tpu_custom_call.1} parent=1 // pred_fallthru
      _
    // Predicated region
    $region18: #{tpu_custom_call.1} parent=1 // pred_check
      _
    $region19: #{tpu_custom_call.1} parent=1 // pred_check_branch
      %47 = sbr.rel (0) target = $region21
    $region20: #{tpu_custom_call.1} parent=1 // pred_region
      %48 = dma.done [#allocation6], 20480
    $region21: #{tpu_custom_call.1} parent=1 // pred_fallthru
      _
    // Predicated region
    $region22: #{tpu_custom_call.1} parent=1 // pred_check
      _
    $region23: #{tpu_custom_call.1} parent=1 // pred_check_branch
      %50 = sbr.rel (0) target = $region25
    $region24: #{tpu_custom_call.1} parent=1 // pred_region
      %51 = dma.done [#allocation6], 640
    $region25: #{tpu_custom_call.1} parent=1 // pred_fallthru
      _
    %v53 = vld [vmem:[#allocation2] sm:$0x3]
    %v54 = vpack.c.bf16 %v53, %v53
    %v55 = vld [vmem:[#allocation5] sm:$0xff]
    %v56 = vld [vmem:[#allocation5 + $0x8] sm:$0xff]
    %v57 = vld [vmem:[#allocation5 + $0x10] sm:$0xff]
    %v58 = vld [vmem:[#allocation5 + $0x18] sm:$0xff]
    %v59 = vld [vmem:[#allocation5 + $0x20] sm:$0xff]
    %v60 = vld [vmem:[#allocation5 + $0x28] sm:$0xff]
    %v61 = vld [vmem:[#allocation5 + $0x30] sm:$0xff]
    %v62 = vld [vmem:[#allocation5 + $0x38] sm:$0xff]
    %v63 = vld [vmem:[#allocation5 + $0x40] sm:$0xff]
    %v64 = vld [vmem:[#allocation5 + $0x48] sm:$0xff]
    %v65 = vld [vmem:[#allocation5 + $0x50] sm:$0xff]
    %v66 = vld [vmem:[#allocation5 + $0x58] sm:$0xff]
    %v67 = vld [vmem:[#allocation5 + $0x60] sm:$0xff]
    %v68 = vld [vmem:[#allocation5 + $0x68] sm:$0xff]
    %v69 = vld [vmem:[#allocation5 + $0x70] sm:$0xff]
    %v70 = vld [vmem:[#allocation5 + $0x78] sm:$0xff]
    %v71 = vld [vmem:[#allocation5 + $0x80] sm:$0xff]
    %v72 = vld [vmem:[#allocation5 + $0x88] sm:$0xff]
    %v73 = vld [vmem:[#allocation5 + $0x90] sm:$0xff]
    %v74 = vld [vmem:[#allocation5 + $0x98] sm:$0xff]
    %v75 = vld [vmem:[#allocation5 + $0xa0] sm:$0xff]
    %v76 = vld [vmem:[#allocation5 + $0xa8] sm:$0xff]
    %v77 = vld [vmem:[#allocation5 + $0xb0] sm:$0xff]
    %v78 = vld [vmem:[#allocation5 + $0xb8] sm:$0xff]
    %v79 = vld [vmem:[#allocation5 + $0xc0] sm:$0xff]
    %v80 = vld [vmem:[#allocation5 + $0xc8] sm:$0xff]
    %v81 = vld [vmem:[#allocation5 + $0xd0] sm:$0xff]
    %v82 = vld [vmem:[#allocation5 + $0xd8] sm:$0xff]
    %v83 = vld [vmem:[#allocation5 + $0xe0] sm:$0xff]
    %v84 = vld [vmem:[#allocation5 + $0xe8] sm:$0xff]
    %v85 = vld [vmem:[#allocation5 + $0xf0] sm:$0xff]
    %v86 = vld [vmem:[#allocation5 + $0xf8] sm:$0xff]
    %v87 = vld [vmem:[#allocation5 + $0x100] sm:$0xff]
    %v88 = vld [vmem:[#allocation5 + $0x108] sm:$0xff]
    %v89 = vld [vmem:[#allocation5 + $0x110] sm:$0xff]
    %v90 = vld [vmem:[#allocation5 + $0x118] sm:$0xff]
    %v91 = vld [vmem:[#allocation5 + $0x120] sm:$0xff]
    %v92 = vld [vmem:[#allocation5 + $0x128] sm:$0xff]
    %v93 = vld [vmem:[#allocation5 + $0x130] sm:$0xff]
    %v94 = vld [vmem:[#allocation5 + $0x138] sm:$0xff]
    %v95 = vld [vmem:[#allocation5 + $0x140] sm:$0xff]
    %v96 = vld [vmem:[#allocation5 + $0x148] sm:$0xff]
    %v97 = vld [vmem:[#allocation5 + $0x150] sm:$0xff]
    %v98 = vld [vmem:[#allocation5 + $0x158] sm:$0xff]
    %v99 = vld [vmem:[#allocation5 + $0x160] sm:$0xff]
    %v100 = vld [vmem:[#allocation5 + $0x168] sm:$0xff]
    %v101 = vld [vmem:[#allocation5 + $0x170] sm:$0xff]
    %v102 = vld [vmem:[#allocation5 + $0x178] sm:$0xff]
    %v103 = vld [vmem:[#allocation5 + $0x180] sm:$0xff]
    %v104 = vld [vmem:[#allocation5 + $0x188] sm:$0xff]
    %v105 = vld [vmem:[#allocation5 + $0x190] sm:$0xff]
    %v106 = vld [vmem:[#allocation5 + $0x198] sm:$0xff]
    %v107 = vld [vmem:[#allocation5 + $0x1a0] sm:$0xff]
    %v108 = vld [vmem:[#allocation5 + $0x1a8] sm:$0xff]
    %v109 = vld [vmem:[#allocation5 + $0x1b0] sm:$0xff]
    %v110 = vld [vmem:[#allocation5 + $0x1b8] sm:$0xff]
    %v111 = vld [vmem:[#allocation5 + $0x1c0] sm:$0xff]
    %v112 = vld [vmem:[#allocation5 + $0x1c8] sm:$0xff]
    %v113 = vld [vmem:[#allocation5 + $0x1d0] sm:$0xff]
    %v114 = vld [vmem:[#allocation5 + $0x1d8] sm:$0xff]
    %v115 = vld [vmem:[#allocation5 + $0x1e0] sm:$0xff]
    %v116 = vld [vmem:[#allocation5 + $0x1e8] sm:$0xff]
    %v117 = vld [vmem:[#allocation5 + $0x1f0] sm:$0xff]
    %v118 = vld [vmem:[#allocation5 + $0x1f8] sm:$0xff]
    %v119 = vld [vmem:[#allocation5 + $0x200] sm:$0xff]
    %v120 = vld [vmem:[#allocation5 + $0x208] sm:$0xff]
    %v121 = vld [vmem:[#allocation5 + $0x210] sm:$0xff]
    %v122 = vld [vmem:[#allocation5 + $0x218] sm:$0xff]
    %v123 = vld [vmem:[#allocation5 + $0x220] sm:$0xff]
    %v124 = vld [vmem:[#allocation5 + $0x228] sm:$0xff]
    %v125 = vld [vmem:[#allocation5 + $0x230] sm:$0xff]
    %v126 = vld [vmem:[#allocation5 + $0x238] sm:$0xff]
    %v127 = vld [vmem:[#allocation5 + $0x240] sm:$0xff]
    %v128 = vld [vmem:[#allocation5 + $0x248] sm:$0xff]
    %v129 = vld [vmem:[#allocation5 + $0x250] sm:$0xff]
    %v130 = vld [vmem:[#allocation5 + $0x258] sm:$0xff]
    %v131 = vld [vmem:[#allocation5 + $0x260] sm:$0xff]
    %v132 = vld [vmem:[#allocation5 + $0x268] sm:$0xff]
    %v133 = vld [vmem:[#allocation5 + $0x270] sm:$0xff]
    %v134 = vld [vmem:[#allocation5 + $0x278] sm:$0xff]
    %v135 = vld [vmem:[#allocation5 + $0x280] sm:$0xff]
    %v136 = vld [vmem:[#allocation5 + $0x288] sm:$0xff]
    %v137 = vld [vmem:[#allocation5 + $0x290] sm:$0xff]
    %v138 = vld [vmem:[#allocation5 + $0x298] sm:$0xff]
    %v139 = vld [vmem:[#allocation5 + $0x2a0] sm:$0xff]
    %v140 = vld [vmem:[#allocation5 + $0x2a8] sm:$0xff]
    %v141 = vld [vmem:[#allocation5 + $0x2b0] sm:$0xff]
    %v142 = vld [vmem:[#allocation5 + $0x2b8] sm:$0xff]
    %v143 = vld [vmem:[#allocation5 + $0x2c0] sm:$0xff]
    %v144 = vld [vmem:[#allocation5 + $0x2c8] sm:$0xff]
    %v145 = vld [vmem:[#allocation5 + $0x2d0] sm:$0xff]
    %v146 = vld [vmem:[#allocation5 + $0x2d8] sm:$0xff]
    %v147 = vld [vmem:[#allocation5 + $0x2e0] sm:$0xff]
    %v148 = vld [vmem:[#allocation5 + $0x2e8] sm:$0xff]
    %v149 = vld [vmem:[#allocation5 + $0x2f0] sm:$0xff]
    %v150 = vld [vmem:[#allocation5 + $0x2f8] sm:$0xff]
    %v151 = vld [vmem:[#allocation5 + $0x300] sm:$0xff]
    %v152 = vld [vmem:[#allocation5 + $0x308] sm:$0xff]
    %v153 = vld [vmem:[#allocation5 + $0x310] sm:$0xff]
    %v154 = vld [vmem:[#allocation5 + $0x318] sm:$0xff]
    %v155 = vld [vmem:[#allocation5 + $0x320] sm:$0xff]
    %v156 = vld [vmem:[#allocation5 + $0x328] sm:$0xff]
    %v157 = vld [vmem:[#allocation5 + $0x330] sm:$0xff]
    %v158 = vld [vmem:[#allocation5 + $0x338] sm:$0xff]
    %v159 = vld [vmem:[#allocation5 + $0x340] sm:$0xff]
    %v160 = vld [vmem:[#allocation5 + $0x348] sm:$0xff]
    %v161 = vld [vmem:[#allocation5 + $0x350] sm:$0xff]
    %v162 = vld [vmem:[#allocation5 + $0x358] sm:$0xff]
    %v163 = vld [vmem:[#allocation5 + $0x360] sm:$0xff]
    %v164 = vld [vmem:[#allocation5 + $0x368] sm:$0xff]
    %v165 = vld [vmem:[#allocation5 + $0x370] sm:$0xff]
    %v166 = vld [vmem:[#allocation5 + $0x378] sm:$0xff]
    %v167 = vld [vmem:[#allocation5 + $0x380] sm:$0xff]
    %v168 = vld [vmem:[#allocation5 + $0x388] sm:$0xff]
    %v169 = vld [vmem:[#allocation5 + $0x390] sm:$0xff]
    %v170 = vld [vmem:[#allocation5 + $0x398] sm:$0xff]
    %v171 = vld [vmem:[#allocation5 + $0x3a0] sm:$0xff]
    %v172 = vld [vmem:[#allocation5 + $0x3a8] sm:$0xff]
    %v173 = vld [vmem:[#allocation5 + $0x3b0] sm:$0xff]
    %v174 = vld [vmem:[#allocation5 + $0x3b8] sm:$0xff]
    %v175 = vld [vmem:[#allocation5 + $0x3c0] sm:$0xff]
    %v176 = vld [vmem:[#allocation5 + $0x3c8] sm:$0xff]
    %v177 = vld [vmem:[#allocation5 + $0x3d0] sm:$0xff]
    %v178 = vld [vmem:[#allocation5 + $0x3d8] sm:$0xff]
    %v179 = vld [vmem:[#allocation5 + $0x3e0] sm:$0xff]
    %v180 = vld [vmem:[#allocation5 + $0x3e8] sm:$0xff]
    %v181 = vld [vmem:[#allocation5 + $0x3f0] sm:$0xff]
    %v182 = vld [vmem:[#allocation5 + $0x3f8] sm:$0xff]
    %v183 = vld [vmem:[#allocation5 + $0x400] sm:$0xff]
    %v184 = vld [vmem:[#allocation5 + $0x408] sm:$0xff]
    %v185 = vld [vmem:[#allocation5 + $0x410] sm:$0xff]
    %v186 = vld [vmem:[#allocation5 + $0x418] sm:$0xff]
    %v187 = vld [vmem:[#allocation5 + $0x420] sm:$0xff]
    %v188 = vld [vmem:[#allocation5 + $0x428] sm:$0xff]
    %v189 = vld [vmem:[#allocation5 + $0x430] sm:$0xff]
    %v190 = vld [vmem:[#allocation5 + $0x438] sm:$0xff]
    %v191 = vld [vmem:[#allocation5 + $0x440] sm:$0xff]
    %v192 = vld [vmem:[#allocation5 + $0x448] sm:$0xff]
    %v193 = vld [vmem:[#allocation5 + $0x450] sm:$0xff]
    %v194 = vld [vmem:[#allocation5 + $0x458] sm:$0xff]
    %v195 = vld [vmem:[#allocation5 + $0x460] sm:$0xff]
    %v196 = vld [vmem:[#allocation5 + $0x468] sm:$0xff]
    %v197 = vld [vmem:[#allocation5 + $0x470] sm:$0xff]
    %v198 = vld [vmem:[#allocation5 + $0x478] sm:$0xff]
    %v199 = vld [vmem:[#allocation5 + $0x480] sm:$0xff]
    %v200 = vld [vmem:[#allocation5 + $0x488] sm:$0xff]
    %v201 = vld [vmem:[#allocation5 + $0x490] sm:$0xff]
    %v202 = vld [vmem:[#allocation5 + $0x498] sm:$0xff]
    %v203 = vld [vmem:[#allocation5 + $0x4a0] sm:$0xff]
    %v204 = vld [vmem:[#allocation5 + $0x4a8] sm:$0xff]
    %v205 = vld [vmem:[#allocation5 + $0x4b0] sm:$0xff]
    %v206 = vld [vmem:[#allocation5 + $0x4b8] sm:$0xff]
    %v207 = vld [vmem:[#allocation5 + $0x4c0] sm:$0xff]
    %v208 = vld [vmem:[#allocation5 + $0x4c8] sm:$0xff]
    %v209 = vld [vmem:[#allocation5 + $0x4d0] sm:$0xff]
    %v210 = vld [vmem:[#allocation5 + $0x4d8] sm:$0xff]
    %v211 = vld [vmem:[#allocation5 + $0x4e0] sm:$0xff]
    %v212 = vld [vmem:[#allocation5 + $0x4e8] sm:$0xff]
    %v213 = vld [vmem:[#allocation5 + $0x4f0] sm:$0xff]
    %v214 = vld [vmem:[#allocation5 + $0x4f8] sm:$0xff]
    %v215 = vld [vmem:[#allocation7] sm:$0xff]
    %v216 = vld [vmem:[#allocation7 + $0x8] sm:$0xff]
    %v217 = vld [vmem:[#allocation7 + $0x10] sm:$0xff]
    %v218 = vld [vmem:[#allocation7 + $0x18] sm:$0xff]
    %v219 = vld [vmem:[#allocation7 + $0x20] sm:$0xff]
    %v225 = vlaneseq
    %v226 = vshrl.u32 %v225, 7
    %v227 = vsub.s32 0, %v226
    %v228 = vrot.slane %v215, %v227
    %v229 = vlaneseq
    %v230 = vshrl.u32 %v229, 7
    %v231 = vsub.s32 1, %v230
    %v232 = vrot.slane %v215, %v231
    %v233 = vlaneseq
    %v234 = vshrl.u32 %v233, 7
    %v235 = vsub.s32 2, %v234
    %v236 = vrot.slane %v215, %v235
    %v237 = vlaneseq
    %v238 = vshrl.u32 %v237, 7
    %v239 = vsub.s32 3, %v238
    %v240 = vrot.slane %v215, %v239
    %v241 = vlaneseq
    %v242 = vshrl.u32 %v241, 7
    %v243 = vsub.s32 4, %v242
    %v244 = vrot.slane %v215, %v243
    %v245 = vlaneseq
    %v246 = vshrl.u32 %v245, 7
    %v247 = vsub.s32 5, %v246
    %v248 = vrot.slane %v215, %v247
    %v249 = vlaneseq
    %v250 = vshrl.u32 %v249, 7
    %v251 = vsub.s32 6, %v250
    %v252 = vrot.slane %v215, %v251
    %v253 = vlaneseq
    %v254 = vshrl.u32 %v253, 7
    %v255 = vsub.s32 7, %v254
    %v256 = vrot.slane %v215, %v255
    %v257 = vlaneseq
    %v258 = vshrl.u32 %v257, 7
    %v259 = vsub.s32 0, %v258
    %v260 = vrot.slane %v216, %v259
    %v261 = vlaneseq
    %v262 = vshrl.u32 %v261, 7
    %v263 = vsub.s32 1, %v262
    %v264 = vrot.slane %v216, %v263
    %v265 = vlaneseq
    %v266 = vshrl.u32 %v265, 7
    %v267 = vsub.s32 2, %v266
    %v268 = vrot.slane %v216, %v267
    %v269 = vlaneseq
    %v270 = vshrl.u32 %v269, 7
    %v271 = vsub.s32 3, %v270
    %v272 = vrot.slane %v216, %v271
    %v273 = vlaneseq
    %v274 = vshrl.u32 %v273, 7
    %v275 = vsub.s32 4, %v274
    %v276 = vrot.slane %v216, %v275
    %v277 = vlaneseq
    %v278 = vshrl.u32 %v277, 7
    %v279 = vsub.s32 5, %v278
    %v280 = vrot.slane %v216, %v279
    %v281 = vlaneseq
    %v282 = vshrl.u32 %v281, 7
    %v283 = vsub.s32 6, %v282
    %v284 = vrot.slane %v216, %v283
    %v285 = vlaneseq
    %v286 = vshrl.u32 %v285, 7
    %v287 = vsub.s32 7, %v286
    %v288 = vrot.slane %v216, %v287
    %v289 = vlaneseq
    %v290 = vshrl.u32 %v289, 7
    %v291 = vsub.s32 0, %v290
    %v292 = vrot.slane %v217, %v291
    %v293 = vlaneseq
    %v294 = vshrl.u32 %v293, 7
    %v295 = vsub.s32 1, %v294
    %v296 = vrot.slane %v217, %v295
    %v297 = vlaneseq
    %v298 = vshrl.u32 %v297, 7
    %v299 = vsub.s32 2, %v298
    %v300 = vrot.slane %v217, %v299
    %v301 = vlaneseq
    %v302 = vshrl.u32 %v301, 7
    %v303 = vsub.s32 3, %v302
    %v304 = vrot.slane %v217, %v303
    %v305 = vlaneseq
    %v306 = vshrl.u32 %v305, 7
    %v307 = vsub.s32 4, %v306
    %v308 = vrot.slane %v217, %v307
    %v309 = vlaneseq
    %v310 = vshrl.u32 %v309, 7
    %v311 = vsub.s32 5, %v310
    %v312 = vrot.slane %v217, %v311
    %v313 = vlaneseq
    %v314 = vshrl.u32 %v313, 7
    %v315 = vsub.s32 6, %v314
    %v316 = vrot.slane %v217, %v315
    %v317 = vlaneseq
    %v318 = vshrl.u32 %v317, 7
    %v319 = vsub.s32 7, %v318
    %v320 = vrot.slane %v217, %v319
    %v321 = vlaneseq
    %v322 = vshrl.u32 %v321, 7
    %v323 = vsub.s32 0, %v322
    %v324 = vrot.slane %v218, %v323
    %v325 = vlaneseq
    %v326 = vshrl.u32 %v325, 7
    %v327 = vsub.s32 1, %v326
    %v328 = vrot.slane %v218, %v327
    %v329 = vlaneseq
    %v330 = vshrl.u32 %v329, 7
    %v331 = vsub.s32 2, %v330
    %v332 = vrot.slane %v218, %v331
    %v333 = vlaneseq
    %v334 = vshrl.u32 %v333, 7
    %v335 = vsub.s32 3, %v334
    %v336 = vrot.slane %v218, %v335
    %v337 = vlaneseq
    %v338 = vshrl.u32 %v337, 7
    %v339 = vsub.s32 4, %v338
    %v340 = vrot.slane %v218, %v339
    %v341 = vlaneseq
    %v342 = vshrl.u32 %v341, 7
    %v343 = vsub.s32 5, %v342
    %v344 = vrot.slane %v218, %v343
    %v345 = vlaneseq
    %v346 = vshrl.u32 %v345, 7
    %v347 = vsub.s32 6, %v346
    %v348 = vrot.slane %v218, %v347
    %v349 = vlaneseq
    %v350 = vshrl.u32 %v349, 7
    %v351 = vsub.s32 7, %v350
    %v352 = vrot.slane %v218, %v351
    %v353 = vlaneseq
    %v354 = vshrl.u32 %v353, 7
    %v355 = vsub.s32 0, %v354
    %v356 = vrot.slane %v219, %v355
    %v357 = vlaneseq
    %v358 = vshrl.u32 %v357, 7
    %v359 = vsub.s32 1, %v358
    %v360 = vrot.slane %v219, %v359
    %v361 = vlaneseq
    %v362 = vshrl.u32 %v361, 7
    %v363 = vsub.s32 2, %v362
    %v364 = vrot.slane %v219, %v363
    %v365 = vlaneseq
    %v366 = vshrl.u32 %v365, 7
    %v367 = vsub.s32 3, %v366
    %v368 = vrot.slane %v219, %v367
    %v369 = vlaneseq
    %v370 = vshrl.u32 %v369, 7
    %v371 = vsub.s32 4, %v370
    %v372 = vrot.slane %v219, %v371
    %v373 = vlaneseq
    %v374 = vshrl.u32 %v373, 7
    %v375 = vsub.s32 5, %v374
    %v376 = vrot.slane %v219, %v375
    %v377 = vlaneseq
    %v378 = vshrl.u32 %v377, 7
    %v379 = vsub.s32 6, %v378
    %v380 = vrot.slane %v219, %v379
    %v381 = vlaneseq
    %v382 = vshrl.u32 %v381, 7
    %v383 = vsub.s32 7, %v382
    %v384 = vrot.slane %v219, %v383
    %v585 = vunpack.c.l.b16 %v55
    %v586 = vunpack.c.h.b16 %v55
    %v587 = vunpack.c.l.b16 %v56
    %v588 = vunpack.c.h.b16 %v56
    %v589 = vunpack.c.l.b16 %v57
    %v590 = vunpack.c.h.b16 %v57
    %v591 = vunpack.c.l.b16 %v58
    %v592 = vunpack.c.h.b16 %v58
    %v593 = vunpack.c.l.b16 %v59
    %v594 = vunpack.c.h.b16 %v59
    %v595 = vunpack.c.l.b16 %v60
    %v596 = vunpack.c.h.b16 %v60
    %v597 = vunpack.c.l.b16 %v61
    %v598 = vunpack.c.h.b16 %v61
    %v599 = vunpack.c.l.b16 %v62
    %v600 = vunpack.c.h.b16 %v62
    %v601 = vunpack.c.l.b16 %v63
    %v602 = vunpack.c.h.b16 %v63
    %v603 = vunpack.c.l.b16 %v64
    %v604 = vunpack.c.h.b16 %v64
    %v605 = vunpack.c.l.b16 %v65
    %v606 = vunpack.c.h.b16 %v65
    %v607 = vunpack.c.l.b16 %v66
    %v608 = vunpack.c.h.b16 %v66
    %v609 = vunpack.c.l.b16 %v67
    %v610 = vunpack.c.h.b16 %v67
    %v611 = vunpack.c.l.b16 %v68
    %v612 = vunpack.c.h.b16 %v68
    %v613 = vunpack.c.l.b16 %v69
    %v614 = vunpack.c.h.b16 %v69
    %v615 = vunpack.c.l.b16 %v70
    %v616 = vunpack.c.h.b16 %v70
    %v617 = vunpack.c.l.b16 %v71
    %v618 = vunpack.c.h.b16 %v71
    %v619 = vunpack.c.l.b16 %v72
    %v620 = vunpack.c.h.b16 %v72
    %v621 = vunpack.c.l.b16 %v73
    %v622 = vunpack.c.h.b16 %v73
    %v623 = vunpack.c.l.b16 %v74
    %v624 = vunpack.c.h.b16 %v74
    %v625 = vunpack.c.l.b16 %v75
    %v626 = vunpack.c.h.b16 %v75
    %v627 = vunpack.c.l.b16 %v76
    %v628 = vunpack.c.h.b16 %v76
    %v629 = vunpack.c.l.b16 %v77
    %v630 = vunpack.c.h.b16 %v77
    %v631 = vunpack.c.l.b16 %v78
    %v632 = vunpack.c.h.b16 %v78
    %v633 = vunpack.c.l.b16 %v79
    %v634 = vunpack.c.h.b16 %v79
    %v635 = vunpack.c.l.b16 %v80
    %v636 = vunpack.c.h.b16 %v80
    %v637 = vunpack.c.l.b16 %v81
    %v638 = vunpack.c.h.b16 %v81
    %v639 = vunpack.c.l.b16 %v82
    %v640 = vunpack.c.h.b16 %v82
    %v641 = vunpack.c.l.b16 %v83
    %v642 = vunpack.c.h.b16 %v83
    %v643 = vunpack.c.l.b16 %v84
    %v644 = vunpack.c.h.b16 %v84
    %v645 = vunpack.c.l.b16 %v85
    %v646 = vunpack.c.h.b16 %v85
    %v647 = vunpack.c.l.b16 %v86
    %v648 = vunpack.c.h.b16 %v86
    %v649 = vunpack.c.l.b16 %v87
    %v650 = vunpack.c.h.b16 %v87
    %v651 = vunpack.c.l.b16 %v88
    %v652 = vunpack.c.h.b16 %v88
    %v653 = vunpack.c.l.b16 %v89
    %v654 = vunpack.c.h.b16 %v89
    %v655 = vunpack.c.l.b16 %v90
    %v656 = vunpack.c.h.b16 %v90
    %v657 = vunpack.c.l.b16 %v91
    %v658 = vunpack.c.h.b16 %v91
    %v659 = vunpack.c.l.b16 %v92
    %v660 = vunpack.c.h.b16 %v92
    %v661 = vunpack.c.l.b16 %v93
    %v662 = vunpack.c.h.b16 %v93
    %v663 = vunpack.c.l.b16 %v94
    %v664 = vunpack.c.h.b16 %v94
    %v665 = vunpack.c.l.b16 %v95
    %v666 = vunpack.c.h.b16 %v95
    %v667 = vunpack.c.l.b16 %v96
    %v668 = vunpack.c.h.b16 %v96
    %v669 = vunpack.c.l.b16 %v97
    %v670 = vunpack.c.h.b16 %v97
    %v671 = vunpack.c.l.b16 %v98
    %v672 = vunpack.c.h.b16 %v98
    %v673 = vunpack.c.l.b16 %v99
    %v674 = vunpack.c.h.b16 %v99
    %v675 = vunpack.c.l.b16 %v100
    %v676 = vunpack.c.h.b16 %v100
    %v677 = vunpack.c.l.b16 %v101
    %v678 = vunpack.c.h.b16 %v101
    %v679 = vunpack.c.l.b16 %v102
    %v680 = vunpack.c.h.b16 %v102
    %v681 = vunpack.c.l.b16 %v103
    %v682 = vunpack.c.h.b16 %v103
    %v683 = vunpack.c.l.b16 %v104
    %v684 = vunpack.c.h.b16 %v104
    %v685 = vunpack.c.l.b16 %v105
    %v686 = vunpack.c.h.b16 %v105
    %v687 = vunpack.c.l.b16 %v106
    %v688 = vunpack.c.h.b16 %v106
    %v689 = vunpack.c.l.b16 %v107
    %v690 = vunpack.c.h.b16 %v107
    %v691 = vunpack.c.l.b16 %v108
    %v692 = vunpack.c.h.b16 %v108
    %v693 = vunpack.c.l.b16 %v109
    %v694 = vunpack.c.h.b16 %v109
    %v695 = vunpack.c.l.b16 %v110
    %v696 = vunpack.c.h.b16 %v110
    %v697 = vunpack.c.l.b16 %v111
    %v698 = vunpack.c.h.b16 %v111
    %v699 = vunpack.c.l.b16 %v112
    %v700 = vunpack.c.h.b16 %v112
    %v701 = vunpack.c.l.b16 %v113
    %v702 = vunpack.c.h.b16 %v113
    %v703 = vunpack.c.l.b16 %v114
    %v704 = vunpack.c.h.b16 %v114
    %v705 = vunpack.c.l.b16 %v115
    %v706 = vunpack.c.h.b16 %v115
    %v707 = vunpack.c.l.b16 %v116
    %v708 = vunpack.c.h.b16 %v116
    %v709 = vunpack.c.l.b16 %v117
    %v710 = vunpack.c.h.b16 %v117
    %v711 = vunpack.c.l.b16 %v118
    %v712 = vunpack.c.h.b16 %v118
    %v713 = vunpack.c.l.b16 %v119
    %v714 = vunpack.c.h.b16 %v119
    %v715 = vunpack.c.l.b16 %v120
    %v716 = vunpack.c.h.b16 %v120
    %v717 = vunpack.c.l.b16 %v121
    %v718 = vunpack.c.h.b16 %v121
    %v719 = vunpack.c.l.b16 %v122
    %v720 = vunpack.c.h.b16 %v122
    %v721 = vunpack.c.l.b16 %v123
    %v722 = vunpack.c.h.b16 %v123
    %v723 = vunpack.c.l.b16 %v124
    %v724 = vunpack.c.h.b16 %v124
    %v725 = vunpack.c.l.b16 %v125
    %v726 = vunpack.c.h.b16 %v125
    %v727 = vunpack.c.l.b16 %v126
    %v728 = vunpack.c.h.b16 %v126
    %v729 = vunpack.c.l.b16 %v127
    %v730 = vunpack.c.h.b16 %v127
    %v731 = vunpack.c.l.b16 %v128
    %v732 = vunpack.c.h.b16 %v128
    %v733 = vunpack.c.l.b16 %v129
    %v734 = vunpack.c.h.b16 %v129
    %v735 = vunpack.c.l.b16 %v130
    %v736 = vunpack.c.h.b16 %v130
    %v737 = vunpack.c.l.b16 %v131
    %v738 = vunpack.c.h.b16 %v131
    %v739 = vunpack.c.l.b16 %v132
    %v740 = vunpack.c.h.b16 %v132
    %v741 = vunpack.c.l.b16 %v133
    %v742 = vunpack.c.h.b16 %v133
    %v743 = vunpack.c.l.b16 %v134
    %v744 = vunpack.c.h.b16 %v134
    %v745 = vunpack.c.l.b16 %v135
    %v746 = vunpack.c.h.b16 %v135
    %v747 = vunpack.c.l.b16 %v136
    %v748 = vunpack.c.h.b16 %v136
    %v749 = vunpack.c.l.b16 %v137
    %v750 = vunpack.c.h.b16 %v137
    %v751 = vunpack.c.l.b16 %v138
    %v752 = vunpack.c.h.b16 %v138
    %v753 = vunpack.c.l.b16 %v139
    %v754 = vunpack.c.h.b16 %v139
    %v755 = vunpack.c.l.b16 %v140
    %v756 = vunpack.c.h.b16 %v140
    %v757 = vunpack.c.l.b16 %v141
    %v758 = vunpack.c.h.b16 %v141
    %v759 = vunpack.c.l.b16 %v142
    %v760 = vunpack.c.h.b16 %v142
    %v761 = vunpack.c.l.b16 %v143
    %v762 = vunpack.c.h.b16 %v143
    %v763 = vunpack.c.l.b16 %v144
    %v764 = vunpack.c.h.b16 %v144
    %v765 = vunpack.c.l.b16 %v145
    %v766 = vunpack.c.h.b16 %v145
    %v767 = vunpack.c.l.b16 %v146
    %v768 = vunpack.c.h.b16 %v146
    %v769 = vunpack.c.l.b16 %v147
    %v770 = vunpack.c.h.b16 %v147
    %v771 = vunpack.c.l.b16 %v148
    %v772 = vunpack.c.h.b16 %v148
    %v773 = vunpack.c.l.b16 %v149
    %v774 = vunpack.c.h.b16 %v149
    %v775 = vunpack.c.l.b16 %v150
    %v776 = vunpack.c.h.b16 %v150
    %v777 = vunpack.c.l.b16 %v151
    %v778 = vunpack.c.h.b16 %v151
    %v779 = vunpack.c.l.b16 %v152
    %v780 = vunpack.c.h.b16 %v152
    %v781 = vunpack.c.l.b16 %v153
    %v782 = vunpack.c.h.b16 %v153
    %v783 = vunpack.c.l.b16 %v154
    %v784 = vunpack.c.h.b16 %v154
    %v785 = vunpack.c.l.b16 %v155
    %v786 = vunpack.c.h.b16 %v155
    %v787 = vunpack.c.l.b16 %v156
    %v788 = vunpack.c.h.b16 %v156
    %v789 = vunpack.c.l.b16 %v157
    %v790 = vunpack.c.h.b16 %v157
    %v791 = vunpack.c.l.b16 %v158
    %v792 = vunpack.c.h.b16 %v158
    %v793 = vunpack.c.l.b16 %v159
    %v794 = vunpack.c.h.b16 %v159
    %v795 = vunpack.c.l.b16 %v160
    %v796 = vunpack.c.h.b16 %v160
    %v797 = vunpack.c.l.b16 %v161
    %v798 = vunpack.c.h.b16 %v161
    %v799 = vunpack.c.l.b16 %v162
    %v800 = vunpack.c.h.b16 %v162
    %v801 = vunpack.c.l.b16 %v163
    %v802 = vunpack.c.h.b16 %v163
    %v803 = vunpack.c.l.b16 %v164
    %v804 = vunpack.c.h.b16 %v164
    %v805 = vunpack.c.l.b16 %v165
    %v806 = vunpack.c.h.b16 %v165
    %v807 = vunpack.c.l.b16 %v166
    %v808 = vunpack.c.h.b16 %v166
    %v809 = vunpack.c.l.b16 %v167
    %v810 = vunpack.c.h.b16 %v167
    %v811 = vunpack.c.l.b16 %v168
    %v812 = vunpack.c.h.b16 %v168
    %v813 = vunpack.c.l.b16 %v169
    %v814 = vunpack.c.h.b16 %v169
    %v815 = vunpack.c.l.b16 %v170
    %v816 = vunpack.c.h.b16 %v170
    %v817 = vunpack.c.l.b16 %v171
    %v818 = vunpack.c.h.b16 %v171
    %v819 = vunpack.c.l.b16 %v172
    %v820 = vunpack.c.h.b16 %v172
    %v821 = vunpack.c.l.b16 %v173
    %v822 = vunpack.c.h.b16 %v173
    %v823 = vunpack.c.l.b16 %v174
    %v824 = vunpack.c.h.b16 %v174
    %v825 = vunpack.c.l.b16 %v175
    %v826 = vunpack.c.h.b16 %v175
    %v827 = vunpack.c.l.b16 %v176
    %v828 = vunpack.c.h.b16 %v176
    %v829 = vunpack.c.l.b16 %v177
    %v830 = vunpack.c.h.b16 %v177
    %v831 = vunpack.c.l.b16 %v178
    %v832 = vunpack.c.h.b16 %v178
    %v833 = vunpack.c.l.b16 %v179
    %v834 = vunpack.c.h.b16 %v179
    %v835 = vunpack.c.l.b16 %v180
    %v836 = vunpack.c.h.b16 %v180
    %v837 = vunpack.c.l.b16 %v181
    %v838 = vunpack.c.h.b16 %v181
    %v839 = vunpack.c.l.b16 %v182
    %v840 = vunpack.c.h.b16 %v182
    %v841 = vunpack.c.l.b16 %v183
    %v842 = vunpack.c.h.b16 %v183
    %v843 = vunpack.c.l.b16 %v184
    %v844 = vunpack.c.h.b16 %v184
    %v845 = vunpack.c.l.b16 %v185
    %v846 = vunpack.c.h.b16 %v185
    %v847 = vunpack.c.l.b16 %v186
    %v848 = vunpack.c.h.b16 %v186
    %v849 = vunpack.c.l.b16 %v187
    %v850 = vunpack.c.h.b16 %v187
    %v851 = vunpack.c.l.b16 %v188
    %v852 = vunpack.c.h.b16 %v188
    %v853 = vunpack.c.l.b16 %v189
    %v854 = vunpack.c.h.b16 %v189
    %v855 = vunpack.c.l.b16 %v190
    %v856 = vunpack.c.h.b16 %v190
    %v857 = vunpack.c.l.b16 %v191
    %v858 = vunpack.c.h.b16 %v191
    %v859 = vunpack.c.l.b16 %v192
    %v860 = vunpack.c.h.b16 %v192
    %v861 = vunpack.c.l.b16 %v193
    %v862 = vunpack.c.h.b16 %v193
    %v863 = vunpack.c.l.b16 %v194
    %v864 = vunpack.c.h.b16 %v194
    %v865 = vunpack.c.l.b16 %v195
    %v866 = vunpack.c.h.b16 %v195
    %v867 = vunpack.c.l.b16 %v196
    %v868 = vunpack.c.h.b16 %v196
    %v869 = vunpack.c.l.b16 %v197
    %v870 = vunpack.c.h.b16 %v197
    %v871 = vunpack.c.l.b16 %v198
    %v872 = vunpack.c.h.b16 %v198
    %v873 = vunpack.c.l.b16 %v199
    %v874 = vunpack.c.h.b16 %v199
    %v875 = vunpack.c.l.b16 %v200
    %v876 = vunpack.c.h.b16 %v200
    %v877 = vunpack.c.l.b16 %v201
    %v878 = vunpack.c.h.b16 %v201
    %v879 = vunpack.c.l.b16 %v202
    %v880 = vunpack.c.h.b16 %v202
    %v881 = vunpack.c.l.b16 %v203
    %v882 = vunpack.c.h.b16 %v203
    %v883 = vunpack.c.l.b16 %v204
    %v884 = vunpack.c.h.b16 %v204
    %v885 = vunpack.c.l.b16 %v205
    %v886 = vunpack.c.h.b16 %v205
    %v887 = vunpack.c.l.b16 %v206
    %v888 = vunpack.c.h.b16 %v206
    %v889 = vunpack.c.l.b16 %v207
    %v890 = vunpack.c.h.b16 %v207
    %v891 = vunpack.c.l.b16 %v208
    %v892 = vunpack.c.h.b16 %v208
    %v893 = vunpack.c.l.b16 %v209
    %v894 = vunpack.c.h.b16 %v209
    %v895 = vunpack.c.l.b16 %v210
    %v896 = vunpack.c.h.b16 %v210
    %v897 = vunpack.c.l.b16 %v211
    %v898 = vunpack.c.h.b16 %v211
    %v899 = vunpack.c.l.b16 %v212
    %v900 = vunpack.c.h.b16 %v212
    %v901 = vunpack.c.l.b16 %v213
    %v902 = vunpack.c.h.b16 %v213
    %v903 = vunpack.c.l.b16 %v214
    %v904 = vunpack.c.h.b16 %v214
    %v905 = vpack.c.b16 %v625, %v585
    %v906 = vpack.c.b16 %v626, %v586
    %v907 = vpack.c.b16 %v627, %v587
    %v908 = vpack.c.b16 %v628, %v588
    %v909 = vpack.c.b16 %v629, %v589
    %v910 = vpack.c.b16 %v630, %v590
    %v911 = vpack.c.b16 %v631, %v591
    %v912 = vpack.c.b16 %v632, %v592
    %v913 = vpack.c.b16 %v633, %v593
    %v914 = vpack.c.b16 %v634, %v594
    %v915 = vpack.c.b16 %v635, %v595
    %v916 = vpack.c.b16 %v636, %v596
    %v917 = vpack.c.b16 %v637, %v597
    %v918 = vpack.c.b16 %v638, %v598
    %v919 = vpack.c.b16 %v639, %v599
    %v920 = vpack.c.b16 %v640, %v600
    %v921 = vpack.c.b16 %v641, %v601
    %v922 = vpack.c.b16 %v642, %v602
    %v923 = vpack.c.b16 %v643, %v603
    %v924 = vpack.c.b16 %v644, %v604
    %v925 = vpack.c.b16 %v645, %v605
    %v926 = vpack.c.b16 %v646, %v606
    %v927 = vpack.c.b16 %v647, %v607
    %v928 = vpack.c.b16 %v648, %v608
    %v929 = vpack.c.b16 %v649, %v609
    %v930 = vpack.c.b16 %v650, %v610
    %v931 = vpack.c.b16 %v651, %v611
    %v932 = vpack.c.b16 %v652, %v612
    %v933 = vpack.c.b16 %v653, %v613
    %v934 = vpack.c.b16 %v654, %v614
    %v935 = vpack.c.b16 %v655, %v615
    %v936 = vpack.c.b16 %v656, %v616
    %v937 = vpack.c.b16 %v657, %v617
    %v938 = vpack.c.b16 %v658, %v618
    %v939 = vpack.c.b16 %v659, %v619
    %v940 = vpack.c.b16 %v660, %v620
    %v941 = vpack.c.b16 %v661, %v621
    %v942 = vpack.c.b16 %v662, %v622
    %v943 = vpack.c.b16 %v663, %v623
    %v944 = vpack.c.b16 %v664, %v624
    %v945 = vpack.c.b16 %v705, %v665
    %v946 = vpack.c.b16 %v706, %v666
    %v947 = vpack.c.b16 %v707, %v667
    %v948 = vpack.c.b16 %v708, %v668
    %v949 = vpack.c.b16 %v709, %v669
    %v950 = vpack.c.b16 %v710, %v670
    %v951 = vpack.c.b16 %v711, %v671
    %v952 = vpack.c.b16 %v712, %v672
    %v953 = vpack.c.b16 %v713, %v673
    %v954 = vpack.c.b16 %v714, %v674
    %v955 = vpack.c.b16 %v715, %v675
    %v956 = vpack.c.b16 %v716, %v676
    %v957 = vpack.c.b16 %v717, %v677
    %v958 = vpack.c.b16 %v718, %v678
    %v959 = vpack.c.b16 %v719, %v679
    %v960 = vpack.c.b16 %v720, %v680
    %v961 = vpack.c.b16 %v721, %v681
    %v962 = vpack.c.b16 %v722, %v682
    %v963 = vpack.c.b16 %v723, %v683
    %v964 = vpack.c.b16 %v724, %v684
    %v965 = vpack.c.b16 %v725, %v685
    %v966 = vpack.c.b16 %v726, %v686
    %v967 = vpack.c.b16 %v727, %v687
    %v968 = vpack.c.b16 %v728, %v688
    %v969 = vpack.c.b16 %v729, %v689
    %v970 = vpack.c.b16 %v730, %v690
    %v971 = vpack.c.b16 %v731, %v691
    %v972 = vpack.c.b16 %v732, %v692
    %v973 = vpack.c.b16 %v733, %v693
    %v974 = vpack.c.b16 %v734, %v694
    %v975 = vpack.c.b16 %v735, %v695
    %v976 = vpack.c.b16 %v736, %v696
    %v977 = vpack.c.b16 %v737, %v697
    %v978 = vpack.c.b16 %v738, %v698
    %v979 = vpack.c.b16 %v739, %v699
    %v980 = vpack.c.b16 %v740, %v700
    %v981 = vpack.c.b16 %v741, %v701
    %v982 = vpack.c.b16 %v742, %v702
    %v983 = vpack.c.b16 %v743, %v703
    %v984 = vpack.c.b16 %v744, %v704
    %v985 = vpack.c.b16 %v785, %v745
    %v986 = vpack.c.b16 %v786, %v746
    %v987 = vpack.c.b16 %v787, %v747
    %v988 = vpack.c.b16 %v788, %v748
    %v989 = vpack.c.b16 %v789, %v749
    %v990 = vpack.c.b16 %v790, %v750
    %v991 = vpack.c.b16 %v791, %v751
    %v992 = vpack.c.b16 %v792, %v752
    %v993 = vpack.c.b16 %v793, %v753
    %v994 = vpack.c.b16 %v794, %v754
    %v995 = vpack.c.b16 %v795, %v755
    %v996 = vpack.c.b16 %v796, %v756
    %v997 = vpack.c.b16 %v797, %v757
    %v998 = vpack.c.b16 %v798, %v758
    %v999 = vpack.c.b16 %v799, %v759
    %v1000 = vpack.c.b16 %v800, %v760
    %v1001 = vpack.c.b16 %v801, %v761
    %v1002 = vpack.c.b16 %v802, %v762
    %v1003 = vpack.c.b16 %v803, %v763
    %v1004 = vpack.c.b16 %v804, %v764
    %v1005 = vpack.c.b16 %v805, %v765
    %v1006 = vpack.c.b16 %v806, %v766
    %v1007 = vpack.c.b16 %v807, %v767
    %v1008 = vpack.c.b16 %v808, %v768
    %v1009 = vpack.c.b16 %v809, %v769
    %v1010 = vpack.c.b16 %v810, %v770
    %v1011 = vpack.c.b16 %v811, %v771
    %v1012 = vpack.c.b16 %v812, %v772
    %v1013 = vpack.c.b16 %v813, %v773
    %v1014 = vpack.c.b16 %v814, %v774
    %v1015 = vpack.c.b16 %v815, %v775
    %v1016 = vpack.c.b16 %v816, %v776
    %v1017 = vpack.c.b16 %v817, %v777
    %v1018 = vpack.c.b16 %v818, %v778
    %v1019 = vpack.c.b16 %v819, %v779
    %v1020 = vpack.c.b16 %v820, %v780
    %v1021 = vpack.c.b16 %v821, %v781
    %v1022 = vpack.c.b16 %v822, %v782
    %v1023 = vpack.c.b16 %v823, %v783
    %v1024 = vpack.c.b16 %v824, %v784
    %v1025 = vpack.c.b16 %v865, %v825
    %v1026 = vpack.c.b16 %v866, %v826
    %v1027 = vpack.c.b16 %v867, %v827
    %v1028 = vpack.c.b16 %v868, %v828
    %v1029 = vpack.c.b16 %v869, %v829
    %v1030 = vpack.c.b16 %v870, %v830
    %v1031 = vpack.c.b16 %v871, %v831
    %v1032 = vpack.c.b16 %v872, %v832
    %v1033 = vpack.c.b16 %v873, %v833
    %v1034 = vpack.c.b16 %v874, %v834
    %v1035 = vpack.c.b16 %v875, %v835
    %v1036 = vpack.c.b16 %v876, %v836
    %v1037 = vpack.c.b16 %v877, %v837
    %v1038 = vpack.c.b16 %v878, %v838
    %v1039 = vpack.c.b16 %v879, %v839
    %v1040 = vpack.c.b16 %v880, %v840
    %v1041 = vpack.c.b16 %v881, %v841
    %v1042 = vpack.c.b16 %v882, %v842
    %v1043 = vpack.c.b16 %v883, %v843
    %v1044 = vpack.c.b16 %v884, %v844
    %v1045 = vpack.c.b16 %v885, %v845
    %v1046 = vpack.c.b16 %v886, %v846
    %v1047 = vpack.c.b16 %v887, %v847
    %v1048 = vpack.c.b16 %v888, %v848
    %v1049 = vpack.c.b16 %v889, %v849
    %v1050 = vpack.c.b16 %v890, %v850
    %v1051 = vpack.c.b16 %v891, %v851
    %v1052 = vpack.c.b16 %v892, %v852
    %v1053 = vpack.c.b16 %v893, %v853
    %v1054 = vpack.c.b16 %v894, %v854
    %v1055 = vpack.c.b16 %v895, %v855
    %v1056 = vpack.c.b16 %v896, %v856
    %v1057 = vpack.c.b16 %v897, %v857
    %v1058 = vpack.c.b16 %v898, %v858
    %v1059 = vpack.c.b16 %v899, %v859
    %v1060 = vpack.c.b16 %v900, %v860
    %v1061 = vpack.c.b16 %v901, %v861
    %v1062 = vpack.c.b16 %v902, %v862
    %v1063 = vpack.c.b16 %v903, %v863
    %v1064 = vpack.c.b16 %v904, %v864
    %vm1225 = vcmask 523264
    %v1227 = vsel %vm1225, %v54, 0
    %1229 = vmatprep.subr.bf16.mxu0 %v906
    %1230 = vmatpush1.bf16.msra.mxu0 %v905
    %1231 = vmatprep.subr.bf16.mxu0 %v946
    %1232 = vmatpush1.bf16.msra.mxu0 %v945
    %1233 = vmatprep.subr.bf16.mxu0 %v986
    %1234 = vmatpush1.bf16.msra.mxu0 %v985
    %1235 = vmatprep.subr.bf16.mxu0 %v1026
    %1236 = vmatpush1.bf16.msra.mxu0 %v1025
    %1237 = vmatprep.subr.bf16.mxu0 0
    %1238 = vmatpush1.bf16.msra.mxu0 0
    %1239 = vmatprep.subr.bf16.mxu0 0
    %1240 = vmatpush1.bf16.msra.mxu0 0
    %1241 = vmatprep.subr.bf16.mxu0 0
    %1242 = vmatpush1.bf16.msra.mxu0 0
    %1243 = vmatprep.subr.bf16.mxu0 0
    %1244 = vmatpush1.bf16.msra.mxu0 0
    %1245 = vmatprep.subr.bf16.mxu0 0
    %1246 = vmatpush1.bf16.msra.mxu0 0
    %1247 = vmatprep.subr.bf16.mxu0 0
    %1248 = vmatpush1.bf16.msra.mxu0 0
    %1249 = vmatprep.subr.bf16.mxu0 0
    %1250 = vmatpush1.bf16.msra.mxu0 0
    %1251 = vmatprep.subr.bf16.mxu0 0
    %1252 = vmatpush1.bf16.msra.mxu0 0
    %1253 = vmatprep.subr.bf16.mxu0 0
    %1254 = vmatpush1.bf16.msra.mxu0 0
    %1255 = vmatprep.subr.bf16.mxu0 0
    %1256 = vmatpush1.bf16.msra.mxu0 0
    %1257 = vmatprep.subr.bf16.mxu0 0
    %1258 = vmatpush1.bf16.msra.mxu0 0
    %1259 = vmatprep.subr.bf16.mxu0 0
    %1260 = vmatpush1.bf16.msra.mxu0 0
    %1261 = vmatprep.mubr.bf16.mxu0 0
    %1262 = vmatmul.mubr.bf16.gmra.mrb[0].mxu0 %v1227
    %v1263 = vpop.f32.mrb[0].mxu0
    %v1264 = vadd.f32 %v228, %v1263
    %v1265 = vpop.f32.mrb[0].mxu0
    %v1266 = vadd.f32 %v232, %v1265
    %v1267 = vpop.f32.mrb[0].mxu0
    %v1268 = vpop.f32.mrb[0].mxu0
    %1269 = vdwg.mxu0
    %1270 = vmatprep.subr.bf16.mxu0 %v908
    %1271 = vmatpush1.bf16.msra.mxu0 %v907
    %1272 = vmatprep.subr.bf16.mxu0 %v948
    %1273 = vmatpush1.bf16.msra.mxu0 %v947
    %1274 = vmatprep.subr.bf16.mxu0 %v988
    %1275 = vmatpush1.bf16.msra.mxu0 %v987
    %1276 = vmatprep.subr.bf16.mxu0 %v1028
    %1277 = vmatpush1.bf16.msra.mxu0 %v1027
    %1278 = vmatprep.subr.bf16.mxu0 0
    %1279 = vmatpush1.bf16.msra.mxu0 0
    %1280 = vmatprep.subr.bf16.mxu0 0
    %1281 = vmatpush1.bf16.msra.mxu0 0
    %1282 = vmatprep.subr.bf16.mxu0 0
    %1283 = vmatpush1.bf16.msra.mxu0 0
    %1284 = vmatprep.subr.bf16.mxu0 0
    %1285 = vmatpush1.bf16.msra.mxu0 0
    %1286 = vmatprep.subr.bf16.mxu0 0
    %1287 = vmatpush1.bf16.msra.mxu0 0
    %1288 = vmatprep.subr.bf16.mxu0 0
    %1289 = vmatpush1.bf16.msra.mxu0 0
    %1290 = vmatprep.subr.bf16.mxu0 0
    %1291 = vmatpush1.bf16.msra.mxu0 0
    %1292 = vmatprep.subr.bf16.mxu0 0
    %1293 = vmatpush1.bf16.msra.mxu0 0
    %1294 = vmatprep.subr.bf16.mxu0 0
    %1295 = vmatpush1.bf16.msra.mxu0 0
    %1296 = vmatprep.subr.bf16.mxu0 0
    %1297 = vmatpush1.bf16.msra.mxu0 0
    %1298 = vmatprep.subr.bf16.mxu0 0
    %1299 = vmatpush1.bf16.msra.mxu0 0
    %1300 = vmatprep.subr.bf16.mxu0 0
    %1301 = vmatpush1.bf16.msra.mxu0 0
    %1302 = vmatprep.mubr.bf16.mxu0 0
    %1303 = vmatmul.mubr.bf16.gmra.mrb[0].mxu0 %v1227
    %v1304 = vpop.f32.mrb[0].mxu0
    %v1305 = vadd.f32 %v236, %v1304
    %v1306 = vpop.f32.mrb[0].mxu0
    %v1307 = vadd.f32 %v240, %v1306
    %v1308 = vpop.f32.mrb[0].mxu0
    %v1309 = vpop.f32.mrb[0].mxu0
    %1310 = vdwg.mxu0
    %1311 = vmatprep.subr.bf16.mxu0 %v910
    %1312 = vmatpush1.bf16.msra.mxu0 %v909
    %1313 = vmatprep.subr.bf16.mxu0 %v950
    %1314 = vmatpush1.bf16.msra.mxu0 %v949
    %1315 = vmatprep.subr.bf16.mxu0 %v990
    %1316 = vmatpush1.bf16.msra.mxu0 %v989
    %1317 = vmatprep.subr.bf16.mxu0 %v1030
    %1318 = vmatpush1.bf16.msra.mxu0 %v1029
    %1319 = vmatprep.subr.bf16.mxu0 0
    %1320 = vmatpush1.bf16.msra.mxu0 0
    %1321 = vmatprep.subr.bf16.mxu0 0
    %1322 = vmatpush1.bf16.msra.mxu0 0
    %1323 = vmatprep.subr.bf16.mxu0 0
    %1324 = vmatpush1.bf16.msra.mxu0 0
    %1325 = vmatprep.subr.bf16.mxu0 0
    %1326 = vmatpush1.bf16.msra.mxu0 0
    %1327 = vmatprep.subr.bf16.mxu0 0
    %1328 = vmatpush1.bf16.msra.mxu0 0
    %1329 = vmatprep.subr.bf16.mxu0 0
    %1330 = vmatpush1.bf16.msra.mxu0 0
    %1331 = vmatprep.subr.bf16.mxu0 0
    %1332 = vmatpush1.bf16.msra.mxu0 0
    %1333 = vmatprep.subr.bf16.mxu0 0
    %1334 = vmatpush1.bf16.msra.mxu0 0
    %1335 = vmatprep.subr.bf16.mxu0 0
    %1336 = vmatpush1.bf16.msra.mxu0 0
    %1337 = vmatprep.subr.bf16.mxu0 0
    %1338 = vmatpush1.bf16.msra.mxu0 0
    %1339 = vmatprep.subr.bf16.mxu0 0
    %1340 = vmatpush1.bf16.msra.mxu0 0
    %1341 = vmatprep.subr.bf16.mxu0 0
    %1342 = vmatpush1.bf16.msra.mxu0 0
    %1343 = vmatprep.mubr.bf16.mxu0 0
    %1344 = vmatmul.mubr.bf16.gmra.mrb[0].mxu0 %v1227
    %v1345 = vpop.f32.mrb[0].mxu0
    %v1346 = vadd.f32 %v244, %v1345
    %v1347 = vpop.f32.mrb[0].mxu0
    %v1348 = vadd.f32 %v248, %v1347
    %v1349 = vpop.f32.mrb[0].mxu0
    %v1350 = vpop.f32.mrb[0].mxu0
    %1351 = vdwg.mxu0
    %1352 = vmatprep.subr.bf16.mxu0 %v912
    %1353 = vmatpush1.bf16.msra.mxu0 %v911
    %1354 = vmatprep.subr.bf16.mxu0 %v952
    %1355 = vmatpush1.bf16.msra.mxu0 %v951
    %1356 = vmatprep.subr.bf16.mxu0 %v992
    %1357 = vmatpush1.bf16.msra.mxu0 %v991
    %1358 = vmatprep.subr.bf16.mxu0 %v1032
    %1359 = vmatpush1.bf16.msra.mxu0 %v1031
    %1360 = vmatprep.subr.bf16.mxu0 0
    %1361 = vmatpush1.bf16.msra.mxu0 0
    %1362 = vmatprep.subr.bf16.mxu0 0
    %1363 = vmatpush1.bf16.msra.mxu0 0
    %1364 = vmatprep.subr.bf16.mxu0 0
    %1365 = vmatpush1.bf16.msra.mxu0 0
    %1366 = vmatprep.subr.bf16.mxu0 0
    %1367 = vmatpush1.bf16.msra.mxu0 0
    %1368 = vmatprep.subr.bf16.mxu0 0
    %1369 = vmatpush1.bf16.msra.mxu0 0
    %1370 = vmatprep.subr.bf16.mxu0 0
    %1371 = vmatpush1.bf16.msra.mxu0 0
    %1372 = vmatprep.subr.bf16.mxu0 0
    %1373 = vmatpush1.bf16.msra.mxu0 0
    %1374 = vmatprep.subr.bf16.mxu0 0
    %1375 = vmatpush1.bf16.msra.mxu0 0
    %1376 = vmatprep.subr.bf16.mxu0 0
    %1377 = vmatpush1.bf16.msra.mxu0 0
    %1378 = vmatprep.subr.bf16.mxu0 0
    %1379 = vmatpush1.bf16.msra.mxu0 0
    %1380 = vmatprep.subr.bf16.mxu0 0
    %1381 = vmatpush1.bf16.msra.mxu0 0
    %1382 = vmatprep.subr.bf16.mxu0 0
    %1383 = vmatpush1.bf16.msra.mxu0 0
    %1384 = vmatprep.mubr.bf16.mxu0 0
    %1385 = vmatmul.mubr.bf16.gmra.mrb[0].mxu0 %v1227
    %v1386 = vpop.f32.mrb[0].mxu0
    %v1387 = vadd.f32 %v252, %v1386
    %v1388 = vpop.f32.mrb[0].mxu0
    %v1389 = vadd.f32 %v256, %v1388
    %v1390 = vpop.f32.mrb[0].mxu0
    %v1391 = vpop.f32.mrb[0].mxu0
    %1392 = vdwg.mxu0
    %1393 = vmatprep.subr.bf16.mxu0 %v914
    %1394 = vmatpush1.bf16.msra.mxu0 %v913
    %1395 = vmatprep.subr.bf16.mxu0 %v954
    %1396 = vmatpush1.bf16.msra.mxu0 %v953
    %1397 = vmatprep.subr.bf16.mxu0 %v994
    %1398 = vmatpush1.bf16.msra.mxu0 %v993
    %1399 = vmatprep.subr.bf16.mxu0 %v1034
    %1400 = vmatpush1.bf16.msra.mxu0 %v1033
    %1401 = vmatprep.subr.bf16.mxu0 0
    %1402 = vmatpush1.bf16.msra.mxu0 0
    %1403 = vmatprep.subr.bf16.mxu0 0
    %1404 = vmatpush1.bf16.msra.mxu0 0
    %1405 = vmatprep.subr.bf16.mxu0 0
    %1406 = vmatpush1.bf16.msra.mxu0 0
    %1407 = vmatprep.subr.bf16.mxu0 0
    %1408 = vmatpush1.bf16.msra.mxu0 0
    %1409 = vmatprep.subr.bf16.mxu0 0
    %1410 = vmatpush1.bf16.msra.mxu0 0
    %1411 = vmatprep.subr.bf16.mxu0 0
    %1412 = vmatpush1.bf16.msra.mxu0 0
    %1413 = vmatprep.subr.bf16.mxu0 0
    %1414 = vmatpush1.bf16.msra.mxu0 0
    %1415 = vmatprep.subr.bf16.mxu0 0
    %1416 = vmatpush1.bf16.msra.mxu0 0
    %1417 = vmatprep.subr.bf16.mxu0 0
    %1418 = vmatpush1.bf16.msra.mxu0 0
    %1419 = vmatprep.subr.bf16.mxu0 0
    %1420 = vmatpush1.bf16.msra.mxu0 0
    %1421 = vmatprep.subr.bf16.mxu0 0
    %1422 = vmatpush1.bf16.msra.mxu0 0
    %1423 = vmatprep.subr.bf16.mxu0 0
    %1424 = vmatpush1.bf16.msra.mxu0 0
    %1425 = vmatprep.mubr.bf16.mxu0 0
    %1426 = vmatmul.mubr.bf16.gmra.mrb[0].mxu0 %v1227
    %v1427 = vpop.f32.mrb[0].mxu0
    %v1428 = vadd.f32 %v260, %v1427
    %v1429 = vpop.f32.mrb[0].mxu0
    %v1430 = vadd.f32 %v264, %v1429
    %v1431 = vpop.f32.mrb[0].mxu0
    %v1432 = vpop.f32.mrb[0].mxu0
    %1433 = vdwg.mxu0
    %1434 = vmatprep.subr.bf16.mxu0 %v916
    %1435 = vmatpush1.bf16.msra.mxu0 %v915
    %1436 = vmatprep.subr.bf16.mxu0 %v956
    %1437 = vmatpush1.bf16.msra.mxu0 %v955
    %1438 = vmatprep.subr.bf16.mxu0 %v996
    %1439 = vmatpush1.bf16.msra.mxu0 %v995
    %1440 = vmatprep.subr.bf16.mxu0 %v1036
    %1441 = vmatpush1.bf16.msra.mxu0 %v1035
    %1442 = vmatprep.subr.bf16.mxu0 0
    %1443 = vmatpush1.bf16.msra.mxu0 0
    %1444 = vmatprep.subr.bf16.mxu0 0
    %1445 = vmatpush1.bf16.msra.mxu0 0
    %1446 = vmatprep.subr.bf16.mxu0 0
    %1447 = vmatpush1.bf16.msra.mxu0 0
    %1448 = vmatprep.subr.bf16.mxu0 0
    %1449 = vmatpush1.bf16.msra.mxu0 0
    %1450 = vmatprep.subr.bf16.mxu0 0
    %1451 = vmatpush1.bf16.msra.mxu0 0
    %1452 = vmatprep.subr.bf16.mxu0 0
    %1453 = vmatpush1.bf16.msra.mxu0 0
    %1454 = vmatprep.subr.bf16.mxu0 0
    %1455 = vmatpush1.bf16.msra.mxu0 0
    %1456 = vmatprep.subr.bf16.mxu0 0
    %1457 = vmatpush1.bf16.msra.mxu0 0
    %1458 = vmatprep.subr.bf16.mxu0 0
    %1459 = vmatpush1.bf16.msra.mxu0 0
    %1460 = vmatprep.subr.bf16.mxu0 0
    %1461 = vmatpush1.bf16.msra.mxu0 0
    %1462 = vmatprep.subr.bf16.mxu0 0
    %1463 = vmatpush1.bf16.msra.mxu0 0
    %1464 = vmatprep.subr.bf16.mxu0 0
    %1465 = vmatpush1.bf16.msra.mxu0 0
    %1466 = vmatprep.mubr.bf16.mxu0 0
    %1467 = vmatmul.mubr.bf16.gmra.mrb[0].mxu0 %v1227
    %v1468 = vpop.f32.mrb[0].mxu0
    %v1469 = vadd.f32 %v268, %v1468
    %v1470 = vpop.f32.mrb[0].mxu0
    %v1471 = vadd.f32 %v272, %v1470
    %v1472 = vpop.f32.mrb[0].mxu0
    %v1473 = vpop.f32.mrb[0].mxu0
    %1474 = vdwg.mxu0
    %1475 = vmatprep.subr.bf16.mxu0 %v918
    %1476 = vmatpush1.bf16.msra.mxu0 %v917
    %1477 = vmatprep.subr.bf16.mxu0 %v958
    %1478 = vmatpush1.bf16.msra.mxu0 %v957
    %1479 = vmatprep.subr.bf16.mxu0 %v998
    %1480 = vmatpush1.bf16.msra.mxu0 %v997
    %1481 = vmatprep.subr.bf16.mxu0 %v1038
    %1482 = vmatpush1.bf16.msra.mxu0 %v1037
    %1483 = vmatprep.subr.bf16.mxu0 0
    %1484 = vmatpush1.bf16.msra.mxu0 0
    %1485 = vmatprep.subr.bf16.mxu0 0
    %1486 = vmatpush1.bf16.msra.mxu0 0
    %1487 = vmatprep.subr.bf16.mxu0 0
    %1488 = vmatpush1.bf16.msra.mxu0 0
    %1489 = vmatprep.subr.bf16.mxu0 0
    %1490 = vmatpush1.bf16.msra.mxu0 0
    %1491 = vmatprep.subr.bf16.mxu0 0
    %1492 = vmatpush1.bf16.msra.mxu0 0
    %1493 = vmatprep.subr.bf16.mxu0 0
    %1494 = vmatpush1.bf16.msra.mxu0 0
    %1495 = vmatprep.subr.bf16.mxu0 0
    %1496 = vmatpush1.bf16.msra.mxu0 0
    %1497 = vmatprep.subr.bf16.mxu0 0
    %1498 = vmatpush1.bf16.msra.mxu0 0
    %1499 = vmatprep.subr.bf16.mxu0 0
    %1500 = vmatpush1.bf16.msra.mxu0 0
    %1501 = vmatprep.subr.bf16.mxu0 0
    %1502 = vmatpush1.bf16.msra.mxu0 0
    %1503 = vmatprep.subr.bf16.mxu0 0
    %1504 = vmatpush1.bf16.msra.mxu0 0
    %1505 = vmatprep.subr.bf16.mxu0 0
    %1506 = vmatpush1.bf16.msra.mxu0 0
    %1507 = vmatprep.mubr.bf16.mxu0 0
    %1508 = vmatmul.mubr.bf16.gmra.mrb[0].mxu0 %v1227
    %v1509 = vpop.f32.mrb[0].mxu0
    %v1510 = vadd.f32 %v276, %v1509
    %v1511 = vpop.f32.mrb[0].mxu0
    %v1512 = vadd.f32 %v280, %v1511
    %v1513 = vpop.f32.mrb[0].mxu0
    %v1514 = vpop.f32.mrb[0].mxu0
    %1515 = vdwg.mxu0
    %1516 = vmatprep.subr.bf16.mxu0 %v920
    %1517 = vmatpush1.bf16.msra.mxu0 %v919
    %1518 = vmatprep.subr.bf16.mxu0 %v960
    %1519 = vmatpush1.bf16.msra.mxu0 %v959
    %1520 = vmatprep.subr.bf16.mxu0 %v1000
    %1521 = vmatpush1.bf16.msra.mxu0 %v999
    %1522 = vmatprep.subr.bf16.mxu0 %v1040
    %1523 = vmatpush1.bf16.msra.mxu0 %v1039
    %1524 = vmatprep.subr.bf16.mxu0 0
    %1525 = vmatpush1.bf16.msra.mxu0 0
    %1526 = vmatprep.subr.bf16.mxu0 0
    %1527 = vmatpush1.bf16.msra.mxu0 0
    %1528 = vmatprep.subr.bf16.mxu0 0
    %1529 = vmatpush1.bf16.msra.mxu0 0
    %1530 = vmatprep.subr.bf16.mxu0 0
    %1531 = vmatpush1.bf16.msra.mxu0 0
    %1532 = vmatprep.subr.bf16.mxu0 0
    %1533 = vmatpush1.bf16.msra.mxu0 0
    %1534 = vmatprep.subr.bf16.mxu0 0
    %1535 = vmatpush1.bf16.msra.mxu0 0
    %1536 = vmatprep.subr.bf16.mxu0 0
    %1537 = vmatpush1.bf16.msra.mxu0 0
    %1538 = vmatprep.subr.bf16.mxu0 0
    %1539 = vmatpush1.bf16.msra.mxu0 0
    %1540 = vmatprep.subr.bf16.mxu0 0
    %1541 = vmatpush1.bf16.msra.mxu0 0
    %1542 = vmatprep.subr.bf16.mxu0 0
    %1543 = vmatpush1.bf16.msra.mxu0 0
    %1544 = vmatprep.subr.bf16.mxu0 0
    %1545 = vmatpush1.bf16.msra.mxu0 0
    %1546 = vmatprep.subr.bf16.mxu0 0
    %1547 = vmatpush1.bf16.msra.mxu0 0
    %1548 = vmatprep.mubr.bf16.mxu0 0
    %1549 = vmatmul.mubr.bf16.gmra.mrb[0].mxu0 %v1227
    %v1550 = vpop.f32.mrb[0].mxu0
    %v1551 = vadd.f32 %v284, %v1550
    %v1552 = vpop.f32.mrb[0].mxu0
    %v1553 = vadd.f32 %v288, %v1552
    %v1554 = vpop.f32.mrb[0].mxu0
    %v1555 = vpop.f32.mrb[0].mxu0
    %1556 = vdwg.mxu0
    %1557 = vmatprep.subr.bf16.mxu0 %v922
    %1558 = vmatpush1.bf16.msra.mxu0 %v921
    %1559 = vmatprep.subr.bf16.mxu0 %v962
    %1560 = vmatpush1.bf16.msra.mxu0 %v961
    %1561 = vmatprep.subr.bf16.mxu0 %v1002
    %1562 = vmatpush1.bf16.msra.mxu0 %v1001
    %1563 = vmatprep.subr.bf16.mxu0 %v1042
    %1564 = vmatpush1.bf16.msra.mxu0 %v1041
    %1565 = vmatprep.subr.bf16.mxu0 0
    %1566 = vmatpush1.bf16.msra.mxu0 0
    %1567 = vmatprep.subr.bf16.mxu0 0
    %1568 = vmatpush1.bf16.msra.mxu0 0
    %1569 = vmatprep.subr.bf16.mxu0 0
    %1570 = vmatpush1.bf16.msra.mxu0 0
    %1571 = vmatprep.subr.bf16.mxu0 0
    %1572 = vmatpush1.bf16.msra.mxu0 0
    %1573 = vmatprep.subr.bf16.mxu0 0
    %1574 = vmatpush1.bf16.msra.mxu0 0
    %1575 = vmatprep.subr.bf16.mxu0 0
    %1576 = vmatpush1.bf16.msra.mxu0 0
    %1577 = vmatprep.subr.bf16.mxu0 0
    %1578 = vmatpush1.bf16.msra.mxu0 0
    %1579 = vmatprep.subr.bf16.mxu0 0
    %1580 = vmatpush1.bf16.msra.mxu0 0
    %1581 = vmatprep.subr.bf16.mxu0 0
    %1582 = vmatpush1.bf16.msra.mxu0 0
    %1583 = vmatprep.subr.bf16.mxu0 0
    %1584 = vmatpush1.bf16.msra.mxu0 0
    %1585 = vmatprep.subr.bf16.mxu0 0
    %1586 = vmatpush1.bf16.msra.mxu0 0
    %1587 = vmatprep.subr.bf16.mxu0 0
    %1588 = vmatpush1.bf16.msra.mxu0 0
    %1589 = vmatprep.mubr.bf16.mxu0 0
    %1590 = vmatmul.mubr.bf16.gmra.mrb[0].mxu0 %v1227
    %v1591 = vpop.f32.mrb[0].mxu0
    %v1592 = vadd.f32 %v292, %v1591
    %v1593 = vpop.f32.mrb[0].mxu0
    %v1594 = vadd.f32 %v296, %v1593
    %v1595 = vpop.f32.mrb[0].mxu0
    %v1596 = vpop.f32.mrb[0].mxu0
    %1597 = vdwg.mxu0
    %1598 = vmatprep.subr.bf16.mxu0 %v924
    %1599 = vmatpush1.bf16.msra.mxu0 %v923
    %1600 = vmatprep.subr.bf16.mxu0 %v964
    %1601 = vmatpush1.bf16.msra.mxu0 %v963
    %1602 = vmatprep.subr.bf16.mxu0 %v1004
    %1603 = vmatpush1.bf16.msra.mxu0 %v1003
    %1604 = vmatprep.subr.bf16.mxu0 %v1044
    %1605 = vmatpush1.bf16.msra.mxu0 %v1043
    %1606 = vmatprep.subr.bf16.mxu0 0
    %1607 = vmatpush1.bf16.msra.mxu0 0
    %1608 = vmatprep.subr.bf16.mxu0 0
    %1609 = vmatpush1.bf16.msra.mxu0 0
    %1610 = vmatprep.subr.bf16.mxu0 0
    %1611 = vmatpush1.bf16.msra.mxu0 0
    %1612 = vmatprep.subr.bf16.mxu0 0
    %1613 = vmatpush1.bf16.msra.mxu0 0
    %1614 = vmatprep.subr.bf16.mxu0 0
    %1615 = vmatpush1.bf16.msra.mxu0 0
    %1616 = vmatprep.subr.bf16.mxu0 0
    %1617 = vmatpush1.bf16.msra.mxu0 0
    %1618 = vmatprep.subr.bf16.mxu0 0
    %1619 = vmatpush1.bf16.msra.mxu0 0
    %1620 = vmatprep.subr.bf16.mxu0 0
    %1621 = vmatpush1.bf16.msra.mxu0 0
    %1622 = vmatprep.subr.bf16.mxu0 0
    %1623 = vmatpush1.bf16.msra.mxu0 0
    %1624 = vmatprep.subr.bf16.mxu0 0
    %1625 = vmatpush1.bf16.msra.mxu0 0
    %1626 = vmatprep.subr.bf16.mxu0 0
    %1627 = vmatpush1.bf16.msra.mxu0 0
    %1628 = vmatprep.subr.bf16.mxu0 0
    %1629 = vmatpush1.bf16.msra.mxu0 0
    %1630 = vmatprep.mubr.bf16.mxu0 0
    %1631 = vmatmul.mubr.bf16.gmra.mrb[0].mxu0 %v1227
    %v1632 = vpop.f32.mrb[0].mxu0
    %v1633 = vadd.f32 %v300, %v1632
    %v1634 = vpop.f32.mrb[0].mxu0
    %v1635 = vadd.f32 %v304, %v1634
    %v1636 = vpop.f32.mrb[0].mxu0
    %v1637 = vpop.f32.mrb[0].mxu0
    %1638 = vdwg.mxu0
    %1639 = vmatprep.subr.bf16.mxu0 %v926
    %1640 = vmatpush1.bf16.msra.mxu0 %v925
    %1641 = vmatprep.subr.bf16.mxu0 %v966
    %1642 = vmatpush1.bf16.msra.mxu0 %v965
    %1643 = vmatprep.subr.bf16.mxu0 %v1006
    %1644 = vmatpush1.bf16.msra.mxu0 %v1005
    %1645 = vmatprep.subr.bf16.mxu0 %v1046
    %1646 = vmatpush1.bf16.msra.mxu0 %v1045
    %1647 = vmatprep.subr.bf16.mxu0 0
    %1648 = vmatpush1.bf16.msra.mxu0 0
    %1649 = vmatprep.subr.bf16.mxu0 0
    %1650 = vmatpush1.bf16.msra.mxu0 0
    %1651 = vmatprep.subr.bf16.mxu0 0
    %1652 = vmatpush1.bf16.msra.mxu0 0
    %1653 = vmatprep.subr.bf16.mxu0 0
    %1654 = vmatpush1.bf16.msra.mxu0 0
    %1655 = vmatprep.subr.bf16.mxu0 0
    %1656 = vmatpush1.bf16.msra.mxu0 0
    %1657 = vmatprep.subr.bf16.mxu0 0
    %1658 = vmatpush1.bf16.msra.mxu0 0
    %1659 = vmatprep.subr.bf16.mxu0 0
    %1660 = vmatpush1.bf16.msra.mxu0 0
    %1661 = vmatprep.subr.bf16.mxu0 0
    %1662 = vmatpush1.bf16.msra.mxu0 0
    %1663 = vmatprep.subr.bf16.mxu0 0
    %1664 = vmatpush1.bf16.msra.mxu0 0
    %1665 = vmatprep.subr.bf16.mxu0 0
    %1666 = vmatpush1.bf16.msra.mxu0 0
    %1667 = vmatprep.subr.bf16.mxu0 0
    %1668 = vmatpush1.bf16.msra.mxu0 0
    %1669 = vmatprep.subr.bf16.mxu0 0
    %1670 = vmatpush1.bf16.msra.mxu0 0
    %1671 = vmatprep.mubr.bf16.mxu0 0
    %1672 = vmatmul.mubr.bf16.gmra.mrb[0].mxu0 %v1227
    %v1673 = vpop.f32.mrb[0].mxu0
    %v1674 = vadd.f32 %v308, %v1673
    %v1675 = vpop.f32.mrb[0].mxu0
    %v1676 = vadd.f32 %v312, %v1675
    %v1677 = vpop.f32.mrb[0].mxu0
    %v1678 = vpop.f32.mrb[0].mxu0
    %1679 = vdwg.mxu0
    %1680 = vmatprep.subr.bf16.mxu0 %v928
    %1681 = vmatpush1.bf16.msra.mxu0 %v927
    %1682 = vmatprep.subr.bf16.mxu0 %v968
    %1683 = vmatpush1.bf16.msra.mxu0 %v967
    %1684 = vmatprep.subr.bf16.mxu0 %v1008
    %1685 = vmatpush1.bf16.msra.mxu0 %v1007
    %1686 = vmatprep.subr.bf16.mxu0 %v1048
    %1687 = vmatpush1.bf16.msra.mxu0 %v1047
    %1688 = vmatprep.subr.bf16.mxu0 0
    %1689 = vmatpush1.bf16.msra.mxu0 0
    %1690 = vmatprep.subr.bf16.mxu0 0
    %1691 = vmatpush1.bf16.msra.mxu0 0
    %1692 = vmatprep.subr.bf16.mxu0 0
    %1693 = vmatpush1.bf16.msra.mxu0 0
    %1694 = vmatprep.subr.bf16.mxu0 0
    %1695 = vmatpush1.bf16.msra.mxu0 0
    %1696 = vmatprep.subr.bf16.mxu0 0
    %1697 = vmatpush1.bf16.msra.mxu0 0
    %1698 = vmatprep.subr.bf16.mxu0 0
    %1699 = vmatpush1.bf16.msra.mxu0 0
    %1700 = vmatprep.subr.bf16.mxu0 0
    %1701 = vmatpush1.bf16.msra.mxu0 0
    %1702 = vmatprep.subr.bf16.mxu0 0
    %1703 = vmatpush1.bf16.msra.mxu0 0
    %1704 = vmatprep.subr.bf16.mxu0 0
    %1705 = vmatpush1.bf16.msra.mxu0 0
    %1706 = vmatprep.subr.bf16.mxu0 0
    %1707 = vmatpush1.bf16.msra.mxu0 0
    %1708 = vmatprep.subr.bf16.mxu0 0
    %1709 = vmatpush1.bf16.msra.mxu0 0
    %1710 = vmatprep.subr.bf16.mxu0 0
    %1711 = vmatpush1.bf16.msra.mxu0 0
    %1712 = vmatprep.mubr.bf16.mxu0 0
    %1713 = vmatmul.mubr.bf16.gmra.mrb[0].mxu0 %v1227
    %v1714 = vpop.f32.mrb[0].mxu0
    %v1715 = vadd.f32 %v316, %v1714
    %v1716 = vpop.f32.mrb[0].mxu0
    %v1717 = vadd.f32 %v320, %v1716
    %v1718 = vpop.f32.mrb[0].mxu0
    %v1719 = vpop.f32.mrb[0].mxu0
    %1720 = vdwg.mxu0
    %1721 = vmatprep.subr.bf16.mxu0 %v930
    %1722 = vmatpush1.bf16.msra.mxu0 %v929
    %1723 = vmatprep.subr.bf16.mxu0 %v970
    %1724 = vmatpush1.bf16.msra.mxu0 %v969
    %1725 = vmatprep.subr.bf16.mxu0 %v1010
    %1726 = vmatpush1.bf16.msra.mxu0 %v1009
    %1727 = vmatprep.subr.bf16.mxu0 %v1050
    %1728 = vmatpush1.bf16.msra.mxu0 %v1049
    %1729 = vmatprep.subr.bf16.mxu0 0
    %1730 = vmatpush1.bf16.msra.mxu0 0
    %1731 = vmatprep.subr.bf16.mxu0 0
    %1732 = vmatpush1.bf16.msra.mxu0 0
    %1733 = vmatprep.subr.bf16.mxu0 0
    %1734 = vmatpush1.bf16.msra.mxu0 0
    %1735 = vmatprep.subr.bf16.mxu0 0
    %1736 = vmatpush1.bf16.msra.mxu0 0
    %1737 = vmatprep.subr.bf16.mxu0 0
    %1738 = vmatpush1.bf16.msra.mxu0 0
    %1739 = vmatprep.subr.bf16.mxu0 0
    %1740 = vmatpush1.bf16.msra.mxu0 0
    %1741 = vmatprep.subr.bf16.mxu0 0
    %1742 = vmatpush1.bf16.msra.mxu0 0
    %1743 = vmatprep.subr.bf16.mxu0 0
    %1744 = vmatpush1.bf16.msra.mxu0 0
    %1745 = vmatprep.subr.bf16.mxu0 0
    %1746 = vmatpush1.bf16.msra.mxu0 0
    %1747 = vmatprep.subr.bf16.mxu0 0
    %1748 = vmatpush1.bf16.msra.mxu0 0
    %1749 = vmatprep.subr.bf16.mxu0 0
    %1750 = vmatpush1.bf16.msra.mxu0 0
    %1751 = vmatprep.subr.bf16.mxu0 0
    %1752 = vmatpush1.bf16.msra.mxu0 0
    %1753 = vmatprep.mubr.bf16.mxu0 0
    %1754 = vmatmul.mubr.bf16.gmra.mrb[0].mxu0 %v1227
    %v1755 = vpop.f32.mrb[0].mxu0
    %v1756 = vadd.f32 %v324, %v1755
    %v1757 = vpop.f32.mrb[0].mxu0
    %v1758 = vadd.f32 %v328, %v1757
    %v1759 = vpop.f32.mrb[0].mxu0
    %v1760 = vpop.f32.mrb[0].mxu0
    %1761 = vdwg.mxu0
    %1762 = vmatprep.subr.bf16.mxu0 %v932
    %1763 = vmatpush1.bf16.msra.mxu0 %v931
    %1764 = vmatprep.subr.bf16.mxu0 %v972
    %1765 = vmatpush1.bf16.msra.mxu0 %v971
    %1766 = vmatprep.subr.bf16.mxu0 %v1012
    %1767 = vmatpush1.bf16.msra.mxu0 %v1011
    %1768 = vmatprep.subr.bf16.mxu0 %v1052
    %1769 = vmatpush1.bf16.msra.mxu0 %v1051
    %1770 = vmatprep.subr.bf16.mxu0 0
    %1771 = vmatpush1.bf16.msra.mxu0 0
    %1772 = vmatprep.subr.bf16.mxu0 0
    %1773 = vmatpush1.bf16.msra.mxu0 0
    %1774 = vmatprep.subr.bf16.mxu0 0
    %1775 = vmatpush1.bf16.msra.mxu0 0
    %1776 = vmatprep.subr.bf16.mxu0 0
    %1777 = vmatpush1.bf16.msra.mxu0 0
    %1778 = vmatprep.subr.bf16.mxu0 0
    %1779 = vmatpush1.bf16.msra.mxu0 0
    %1780 = vmatprep.subr.bf16.mxu0 0
    %1781 = vmatpush1.bf16.msra.mxu0 0
    %1782 = vmatprep.subr.bf16.mxu0 0
    %1783 = vmatpush1.bf16.msra.mxu0 0
    %1784 = vmatprep.subr.bf16.mxu0 0
    %1785 = vmatpush1.bf16.msra.mxu0 0
    %1786 = vmatprep.subr.bf16.mxu0 0
    %1787 = vmatpush1.bf16.msra.mxu0 0
    %1788 = vmatprep.subr.bf16.mxu0 0
    %1789 = vmatpush1.bf16.msra.mxu0 0
    %1790 = vmatprep.subr.bf16.mxu0 0
    %1791 = vmatpush1.bf16.msra.mxu0 0
    %1792 = vmatprep.subr.bf16.mxu0 0
    %1793 = vmatpush1.bf16.msra.mxu0 0
    %1794 = vmatprep.mubr.bf16.mxu0 0
    %1795 = vmatmul.mubr.bf16.gmra.mrb[0].mxu0 %v1227
    %v1796 = vpop.f32.mrb[0].mxu0
    %v1797 = vadd.f32 %v332, %v1796
    %v1798 = vpop.f32.mrb[0].mxu0
    %v1799 = vadd.f32 %v336, %v1798
    %v1800 = vpop.f32.mrb[0].mxu0
    %v1801 = vpop.f32.mrb[0].mxu0
    %1802 = vdwg.mxu0
    %1803 = vmatprep.subr.bf16.mxu0 %v934
    %1804 = vmatpush1.bf16.msra.mxu0 %v933
    %1805 = vmatprep.subr.bf16.mxu0 %v974
    %1806 = vmatpush1.bf16.msra.mxu0 %v973
    %1807 = vmatprep.subr.bf16.mxu0 %v1014
    %1808 = vmatpush1.bf16.msra.mxu0 %v1013
    %1809 = vmatprep.subr.bf16.mxu0 %v1054
    %1810 = vmatpush1.bf16.msra.mxu0 %v1053
    %1811 = vmatprep.subr.bf16.mxu0 0
    %1812 = vmatpush1.bf16.msra.mxu0 0
    %1813 = vmatprep.subr.bf16.mxu0 0
    %1814 = vmatpush1.bf16.msra.mxu0 0
    %1815 = vmatprep.subr.bf16.mxu0 0
    %1816 = vmatpush1.bf16.msra.mxu0 0
    %1817 = vmatprep.subr.bf16.mxu0 0
    %1818 = vmatpush1.bf16.msra.mxu0 0
    %1819 = vmatprep.subr.bf16.mxu0 0
    %1820 = vmatpush1.bf16.msra.mxu0 0
    %1821 = vmatprep.subr.bf16.mxu0 0
    %1822 = vmatpush1.bf16.msra.mxu0 0
    %1823 = vmatprep.subr.bf16.mxu0 0
    %1824 = vmatpush1.bf16.msra.mxu0 0
    %1825 = vmatprep.subr.bf16.mxu0 0
    %1826 = vmatpush1.bf16.msra.mxu0 0
    %1827 = vmatprep.subr.bf16.mxu0 0
    %1828 = vmatpush1.bf16.msra.mxu0 0
    %1829 = vmatprep.subr.bf16.mxu0 0
    %1830 = vmatpush1.bf16.msra.mxu0 0
    %1831 = vmatprep.subr.bf16.mxu0 0
    %1832 = vmatpush1.bf16.msra.mxu0 0
    %1833 = vmatprep.subr.bf16.mxu0 0
    %1834 = vmatpush1.bf16.msra.mxu0 0
    %1835 = vmatprep.mubr.bf16.mxu0 0
    %1836 = vmatmul.mubr.bf16.gmra.mrb[0].mxu0 %v1227
    %v1837 = vpop.f32.mrb[0].mxu0
    %v1838 = vadd.f32 %v340, %v1837
    %v1839 = vpop.f32.mrb[0].mxu0
    %v1840 = vadd.f32 %v344, %v1839
    %v1841 = vpop.f32.mrb[0].mxu0
    %v1842 = vpop.f32.mrb[0].mxu0
    %1843 = vdwg.mxu0
    %1844 = vmatprep.subr.bf16.mxu0 %v936
    %1845 = vmatpush1.bf16.msra.mxu0 %v935
    %1846 = vmatprep.subr.bf16.mxu0 %v976
    %1847 = vmatpush1.bf16.msra.mxu0 %v975
    %1848 = vmatprep.subr.bf16.mxu0 %v1016
    %1849 = vmatpush1.bf16.msra.mxu0 %v1015
    %1850 = vmatprep.subr.bf16.mxu0 %v1056
    %1851 = vmatpush1.bf16.msra.mxu0 %v1055
    %1852 = vmatprep.subr.bf16.mxu0 0
    %1853 = vmatpush1.bf16.msra.mxu0 0
    %1854 = vmatprep.subr.bf16.mxu0 0
    %1855 = vmatpush1.bf16.msra.mxu0 0
    %1856 = vmatprep.subr.bf16.mxu0 0
    %1857 = vmatpush1.bf16.msra.mxu0 0
    %1858 = vmatprep.subr.bf16.mxu0 0
    %1859 = vmatpush1.bf16.msra.mxu0 0
    %1860 = vmatprep.subr.bf16.mxu0 0
    %1861 = vmatpush1.bf16.msra.mxu0 0
    %1862 = vmatprep.subr.bf16.mxu0 0
    %1863 = vmatpush1.bf16.msra.mxu0 0
    %1864 = vmatprep.subr.bf16.mxu0 0
    %1865 = vmatpush1.bf16.msra.mxu0 0
    %1866 = vmatprep.subr.bf16.mxu0 0
    %1867 = vmatpush1.bf16.msra.mxu0 0
    %1868 = vmatprep.subr.bf16.mxu0 0
    %1869 = vmatpush1.bf16.msra.mxu0 0
    %1870 = vmatprep.subr.bf16.mxu0 0
    %1871 = vmatpush1.bf16.msra.mxu0 0
    %1872 = vmatprep.subr.bf16.mxu0 0
    %1873 = vmatpush1.bf16.msra.mxu0 0
    %1874 = vmatprep.subr.bf16.mxu0 0
    %1875 = vmatpush1.bf16.msra.mxu0 0
    %1876 = vmatprep.mubr.bf16.mxu0 0
    %1877 = vmatmul.mubr.bf16.gmra.mrb[0].mxu0 %v1227
    %v1878 = vpop.f32.mrb[0].mxu0
    %v1879 = vadd.f32 %v348, %v1878
    %v1880 = vpop.f32.mrb[0].mxu0
    %v1881 = vadd.f32 %v352, %v1880
    %v1882 = vpop.f32.mrb[0].mxu0
    %v1883 = vpop.f32.mrb[0].mxu0
    %1884 = vdwg.mxu0
    %1885 = vmatprep.subr.bf16.mxu0 %v938
    %1886 = vmatpush1.bf16.msra.mxu0 %v937
    %1887 = vmatprep.subr.bf16.mxu0 %v978
    %1888 = vmatpush1.bf16.msra.mxu0 %v977
    %1889 = vmatprep.subr.bf16.mxu0 %v1018
    %1890 = vmatpush1.bf16.msra.mxu0 %v1017
    %1891 = vmatprep.subr.bf16.mxu0 %v1058
    %1892 = vmatpush1.bf16.msra.mxu0 %v1057
    %1893 = vmatprep.subr.bf16.mxu0 0
    %1894 = vmatpush1.bf16.msra.mxu0 0
    %1895 = vmatprep.subr.bf16.mxu0 0
    %1896 = vmatpush1.bf16.msra.mxu0 0
    %1897 = vmatprep.subr.bf16.mxu0 0
    %1898 = vmatpush1.bf16.msra.mxu0 0
    %1899 = vmatprep.subr.bf16.mxu0 0
    %1900 = vmatpush1.bf16.msra.mxu0 0
    %1901 = vmatprep.subr.bf16.mxu0 0
    %1902 = vmatpush1.bf16.msra.mxu0 0
    %1903 = vmatprep.subr.bf16.mxu0 0
    %1904 = vmatpush1.bf16.msra.mxu0 0
    %1905 = vmatprep.subr.bf16.mxu0 0
    %1906 = vmatpush1.bf16.msra.mxu0 0
    %1907 = vmatprep.subr.bf16.mxu0 0
    %1908 = vmatpush1.bf16.msra.mxu0 0
    %1909 = vmatprep.subr.bf16.mxu0 0
    %1910 = vmatpush1.bf16.msra.mxu0 0
    %1911 = vmatprep.subr.bf16.mxu0 0
    %1912 = vmatpush1.bf16.msra.mxu0 0
    %1913 = vmatprep.subr.bf16.mxu0 0
    %1914 = vmatpush1.bf16.msra.mxu0 0
    %1915 = vmatprep.subr.bf16.mxu0 0
    %1916 = vmatpush1.bf16.msra.mxu0 0
    %1917 = vmatprep.mubr.bf16.mxu0 0
    %1918 = vmatmul.mubr.bf16.gmra.mrb[0].mxu0 %v1227
    %v1919 = vpop.f32.mrb[0].mxu0
    %v1920 = vadd.f32 %v356, %v1919
    %v1921 = vpop.f32.mrb[0].mxu0
    %v1922 = vadd.f32 %v360, %v1921
    %v1923 = vpop.f32.mrb[0].mxu0
    %v1924 = vpop.f32.mrb[0].mxu0
    %1925 = vdwg.mxu0
    %1926 = vmatprep.subr.bf16.mxu0 %v940
    %1927 = vmatpush1.bf16.msra.mxu0 %v939
    %1928 = vmatprep.subr.bf16.mxu0 %v980
    %1929 = vmatpush1.bf16.msra.mxu0 %v979
    %1930 = vmatprep.subr.bf16.mxu0 %v1020
    %1931 = vmatpush1.bf16.msra.mxu0 %v1019
    %1932 = vmatprep.subr.bf16.mxu0 %v1060
    %1933 = vmatpush1.bf16.msra.mxu0 %v1059
    %1934 = vmatprep.subr.bf16.mxu0 0
    %1935 = vmatpush1.bf16.msra.mxu0 0
    %1936 = vmatprep.subr.bf16.mxu0 0
    %1937 = vmatpush1.bf16.msra.mxu0 0
    %1938 = vmatprep.subr.bf16.mxu0 0
    %1939 = vmatpush1.bf16.msra.mxu0 0
    %1940 = vmatprep.subr.bf16.mxu0 0
    %1941 = vmatpush1.bf16.msra.mxu0 0
    %1942 = vmatprep.subr.bf16.mxu0 0
    %1943 = vmatpush1.bf16.msra.mxu0 0
    %1944 = vmatprep.subr.bf16.mxu0 0
    %1945 = vmatpush1.bf16.msra.mxu0 0
    %1946 = vmatprep.subr.bf16.mxu0 0
    %1947 = vmatpush1.bf16.msra.mxu0 0
    %1948 = vmatprep.subr.bf16.mxu0 0
    %1949 = vmatpush1.bf16.msra.mxu0 0
    %1950 = vmatprep.subr.bf16.mxu0 0
    %1951 = vmatpush1.bf16.msra.mxu0 0
    %1952 = vmatprep.subr.bf16.mxu0 0
    %1953 = vmatpush1.bf16.msra.mxu0 0
    %1954 = vmatprep.subr.bf16.mxu0 0
    %1955 = vmatpush1.bf16.msra.mxu0 0
    %1956 = vmatprep.subr.bf16.mxu0 0
    %1957 = vmatpush1.bf16.msra.mxu0 0
    %1958 = vmatprep.mubr.bf16.mxu0 0
    %1959 = vmatmul.mubr.bf16.gmra.mrb[0].mxu0 %v1227
    %v1960 = vpop.f32.mrb[0].mxu0
    %v1961 = vadd.f32 %v364, %v1960
    %v1962 = vpop.f32.mrb[0].mxu0
    %v1963 = vadd.f32 %v368, %v1962
    %v1964 = vpop.f32.mrb[0].mxu0
    %v1965 = vpop.f32.mrb[0].mxu0
    %1966 = vdwg.mxu0
    %1967 = vmatprep.subr.bf16.mxu0 %v942
    %1968 = vmatpush1.bf16.msra.mxu0 %v941
    %1969 = vmatprep.subr.bf16.mxu0 %v982
    %1970 = vmatpush1.bf16.msra.mxu0 %v981
    %1971 = vmatprep.subr.bf16.mxu0 %v1022
    %1972 = vmatpush1.bf16.msra.mxu0 %v1021
    %1973 = vmatprep.subr.bf16.mxu0 %v1062
    %1974 = vmatpush1.bf16.msra.mxu0 %v1061
    %1975 = vmatprep.subr.bf16.mxu0 0
    %1976 = vmatpush1.bf16.msra.mxu0 0
    %1977 = vmatprep.subr.bf16.mxu0 0
    %1978 = vmatpush1.bf16.msra.mxu0 0
    %1979 = vmatprep.subr.bf16.mxu0 0
    %1980 = vmatpush1.bf16.msra.mxu0 0
    %1981 = vmatprep.subr.bf16.mxu0 0
    %1982 = vmatpush1.bf16.msra.mxu0 0
    %1983 = vmatprep.subr.bf16.mxu0 0
    %1984 = vmatpush1.bf16.msra.mxu0 0
    %1985 = vmatprep.subr.bf16.mxu0 0
    %1986 = vmatpush1.bf16.msra.mxu0 0
    %1987 = vmatprep.subr.bf16.mxu0 0
    %1988 = vmatpush1.bf16.msra.mxu0 0
    %1989 = vmatprep.subr.bf16.mxu0 0
    %1990 = vmatpush1.bf16.msra.mxu0 0
    %1991 = vmatprep.subr.bf16.mxu0 0
    %1992 = vmatpush1.bf16.msra.mxu0 0
    %1993 = vmatprep.subr.bf16.mxu0 0
    %1994 = vmatpush1.bf16.msra.mxu0 0
    %1995 = vmatprep.subr.bf16.mxu0 0
    %1996 = vmatpush1.bf16.msra.mxu0 0
    %1997 = vmatprep.subr.bf16.mxu0 0
    %1998 = vmatpush1.bf16.msra.mxu0 0
    %1999 = vmatprep.mubr.bf16.mxu0 0
    %2000 = vmatmul.mubr.bf16.gmra.mrb[0].mxu0 %v1227
    %v2001 = vpop.f32.mrb[0].mxu0
    %v2002 = vadd.f32 %v372, %v2001
    %v2003 = vpop.f32.mrb[0].mxu0
    %v2004 = vadd.f32 %v376, %v2003
    %v2005 = vpop.f32.mrb[0].mxu0
    %v2006 = vpop.f32.mrb[0].mxu0
    %2007 = vdwg.mxu0
    %2008 = vmatprep.subr.bf16.mxu0 %v944
    %2009 = vmatpush1.bf16.msra.mxu0 %v943
    %2010 = vmatprep.subr.bf16.mxu0 %v984
    %2011 = vmatpush1.bf16.msra.mxu0 %v983
    %2012 = vmatprep.subr.bf16.mxu0 %v1024
    %2013 = vmatpush1.bf16.msra.mxu0 %v1023
    %2014 = vmatprep.subr.bf16.mxu0 %v1064
    %2015 = vmatpush1.bf16.msra.mxu0 %v1063
    %2016 = vmatprep.subr.bf16.mxu0 0
    %2017 = vmatpush1.bf16.msra.mxu0 0
    %2018 = vmatprep.subr.bf16.mxu0 0
    %2019 = vmatpush1.bf16.msra.mxu0 0
    %2020 = vmatprep.subr.bf16.mxu0 0
    %2021 = vmatpush1.bf16.msra.mxu0 0
    %2022 = vmatprep.subr.bf16.mxu0 0
    %2023 = vmatpush1.bf16.msra.mxu0 0
    %2024 = vmatprep.subr.bf16.mxu0 0
    %2025 = vmatpush1.bf16.msra.mxu0 0
    %2026 = vmatprep.subr.bf16.mxu0 0
    %2027 = vmatpush1.bf16.msra.mxu0 0
    %2028 = vmatprep.subr.bf16.mxu0 0
    %2029 = vmatpush1.bf16.msra.mxu0 0
    %2030 = vmatprep.subr.bf16.mxu0 0
    %2031 = vmatpush1.bf16.msra.mxu0 0
    %2032 = vmatprep.subr.bf16.mxu0 0
    %2033 = vmatpush1.bf16.msra.mxu0 0
    %2034 = vmatprep.subr.bf16.mxu0 0
    %2035 = vmatpush1.bf16.msra.mxu0 0
    %2036 = vmatprep.subr.bf16.mxu0 0
    %2037 = vmatpush1.bf16.msra.mxu0 0
    %2038 = vmatprep.subr.bf16.mxu0 0
    %2039 = vmatpush1.bf16.msra.mxu0 0
    %2040 = vmatprep.mubr.bf16.mxu0 0
    %2041 = vmatmul.mubr.bf16.gmra.mrb[0].mxu0 %v1227
    %v2042 = vpop.f32.mrb[0].mxu0
    %v2043 = vadd.f32 %v380, %v2042
    %v2044 = vpop.f32.mrb[0].mxu0
    %v2045 = vadd.f32 %v384, %v2044
    %v2046 = vpop.f32.mrb[0].mxu0
    %v2047 = vpop.f32.mrb[0].mxu0
    %2048 = vdwg.mxu0
    %v2089 = vcombine.low %v1264, %v1266
    %v2090 = vcombine.low %v1305, %v1307
    %v2092 = vunpack.c.l.s4 1983009808
    %v2093 = vunpack.c.0.s8 %v2092
    %v2094 = vlaneseq
    %v2095 = vshrl.u32 %v2094, 7
    %v2096 = vsub.s32 %v2093, %v2095
    %v2097 = vrot.slane %v2089, %v2096
    %v2099 = vunpack.c.l.s4 1983009808
    %v2100 = vunpack.c.0.s8 %v2099
    %v2101 = vlaneseq
    %v2102 = vshrl.u32 %v2101, 7
    %v2103 = vsub.s32 %v2100, %v2102
    %v2104 = vrot.slane %v2090, %v2103
    %v2105 = vcombine.low %v2097, %v2104
    %v2106 = vcombine.low %v1346, %v1348
    %v2107 = vcombine.low %v1387, %v1389
    %v2109 = vunpack.c.l.s4 1983009808
    %v2110 = vunpack.c.0.s8 %v2109
    %v2111 = vlaneseq
    %v2112 = vshrl.u32 %v2111, 7
    %v2113 = vsub.s32 %v2110, %v2112
    %v2114 = vrot.slane %v2106, %v2113
    %v2116 = vunpack.c.l.s4 1983009808
    %v2117 = vunpack.c.0.s8 %v2116
    %v2118 = vlaneseq
    %v2119 = vshrl.u32 %v2118, 7
    %v2120 = vsub.s32 %v2117, %v2119
    %v2121 = vrot.slane %v2107, %v2120
    %v2122 = vcombine.low %v2114, %v2121
    %v2123 = vcombine.low %v1428, %v1430
    %v2124 = vcombine.low %v1469, %v1471
    %v2126 = vunpack.c.l.s4 1983009808
    %v2127 = vunpack.c.0.s8 %v2126
    %v2128 = vlaneseq
    %v2129 = vshrl.u32 %v2128, 7
    %v2130 = vsub.s32 %v2127, %v2129
    %v2131 = vrot.slane %v2123, %v2130
    %v2133 = vunpack.c.l.s4 1983009808
    %v2134 = vunpack.c.0.s8 %v2133
    %v2135 = vlaneseq
    %v2136 = vshrl.u32 %v2135, 7
    %v2137 = vsub.s32 %v2134, %v2136
    %v2138 = vrot.slane %v2124, %v2137
    %v2139 = vcombine.low %v2131, %v2138
    %v2140 = vcombine.low %v1510, %v1512
    %v2141 = vcombine.low %v1551, %v1553
    %v2143 = vunpack.c.l.s4 1983009808
    %v2144 = vunpack.c.0.s8 %v2143
    %v2145 = vlaneseq
    %v2146 = vshrl.u32 %v2145, 7
    %v2147 = vsub.s32 %v2144, %v2146
    %v2148 = vrot.slane %v2140, %v2147
    %v2150 = vunpack.c.l.s4 1983009808
    %v2151 = vunpack.c.0.s8 %v2150
    %v2152 = vlaneseq
    %v2153 = vshrl.u32 %v2152, 7
    %v2154 = vsub.s32 %v2151, %v2153
    %v2155 = vrot.slane %v2141, %v2154
    %v2156 = vcombine.low %v2148, %v2155
    %v2157 = vcombine.low %v1592, %v1594
    %v2158 = vcombine.low %v1633, %v1635
    %v2160 = vunpack.c.l.s4 1983009808
    %v2161 = vunpack.c.0.s8 %v2160
    %v2162 = vlaneseq
    %v2163 = vshrl.u32 %v2162, 7
    %v2164 = vsub.s32 %v2161, %v2163
    %v2165 = vrot.slane %v2157, %v2164
    %v2167 = vunpack.c.l.s4 1983009808
    %v2168 = vunpack.c.0.s8 %v2167
    %v2169 = vlaneseq
    %v2170 = vshrl.u32 %v2169, 7
    %v2171 = vsub.s32 %v2168, %v2170
    %v2172 = vrot.slane %v2158, %v2171
    %v2173 = vcombine.low %v2165, %v2172
    %v2174 = vcombine.low %v1674, %v1676
    %v2175 = vcombine.low %v1715, %v1717
    %v2177 = vunpack.c.l.s4 1983009808
    %v2178 = vunpack.c.0.s8 %v2177
    %v2179 = vlaneseq
    %v2180 = vshrl.u32 %v2179, 7
    %v2181 = vsub.s32 %v2178, %v2180
    %v2182 = vrot.slane %v2174, %v2181
    %v2184 = vunpack.c.l.s4 1983009808
    %v2185 = vunpack.c.0.s8 %v2184
    %v2186 = vlaneseq
    %v2187 = vshrl.u32 %v2186, 7
    %v2188 = vsub.s32 %v2185, %v2187
    %v2189 = vrot.slane %v2175, %v2188
    %v2190 = vcombine.low %v2182, %v2189
    %v2191 = vcombine.low %v1756, %v1758
    %v2192 = vcombine.low %v1797, %v1799
    %v2194 = vunpack.c.l.s4 1983009808
    %v2195 = vunpack.c.0.s8 %v2194
    %v2196 = vlaneseq
    %v2197 = vshrl.u32 %v2196, 7
    %v2198 = vsub.s32 %v2195, %v2197
    %v2199 = vrot.slane %v2191, %v2198
    %v2201 = vunpack.c.l.s4 1983009808
    %v2202 = vunpack.c.0.s8 %v2201
    %v2203 = vlaneseq
    %v2204 = vshrl.u32 %v2203, 7
    %v2205 = vsub.s32 %v2202, %v2204
    %v2206 = vrot.slane %v2192, %v2205
    %v2207 = vcombine.low %v2199, %v2206
    %v2208 = vcombine.low %v1838, %v1840
    %v2209 = vcombine.low %v1879, %v1881
    %v2211 = vunpack.c.l.s4 1983009808
    %v2212 = vunpack.c.0.s8 %v2211
    %v2213 = vlaneseq
    %v2214 = vshrl.u32 %v2213, 7
    %v2215 = vsub.s32 %v2212, %v2214
    %v2216 = vrot.slane %v2208, %v2215
    %v2218 = vunpack.c.l.s4 1983009808
    %v2219 = vunpack.c.0.s8 %v2218
    %v2220 = vlaneseq
    %v2221 = vshrl.u32 %v2220, 7
    %v2222 = vsub.s32 %v2219, %v2221
    %v2223 = vrot.slane %v2209, %v2222
    %v2224 = vcombine.low %v2216, %v2223
    %v2225 = vcombine.low %v1920, %v1922
    %v2226 = vcombine.low %v1961, %v1963
    %v2228 = vunpack.c.l.s4 1983009808
    %v2229 = vunpack.c.0.s8 %v2228
    %v2230 = vlaneseq
    %v2231 = vshrl.u32 %v2230, 7
    %v2232 = vsub.s32 %v2229, %v2231
    %v2233 = vrot.slane %v2225, %v2232
    %v2235 = vunpack.c.l.s4 1983009808
    %v2236 = vunpack.c.0.s8 %v2235
    %v2237 = vlaneseq
    %v2238 = vshrl.u32 %v2237, 7
    %v2239 = vsub.s32 %v2236, %v2238
    %v2240 = vrot.slane %v2226, %v2239
    %v2241 = vcombine.low %v2233, %v2240
    %v2242 = vcombine.low %v2002, %v2004
    %v2243 = vcombine.low %v2043, %v2045
    %v2245 = vunpack.c.l.s4 1983009808
    %v2246 = vunpack.c.0.s8 %v2245
    %v2247 = vlaneseq
    %v2248 = vshrl.u32 %v2247, 7
    %v2249 = vsub.s32 %v2246, %v2248
    %v2250 = vrot.slane %v2242, %v2249
    %v2252 = vunpack.c.l.s4 1983009808
    %v2253 = vunpack.c.0.s8 %v2252
    %v2254 = vlaneseq
    %v2255 = vshrl.u32 %v2254, 7
    %v2256 = vsub.s32 %v2253, %v2255
    %v2257 = vrot.slane %v2243, %v2256
    %v2258 = vcombine.low %v2250, %v2257
    %2269 = vst [vmem:[#allocation8] sm:$0xff] %v2105
    %2270 = vst [vmem:[#allocation8 + $0x8] sm:$0xff] %v2122
    %2271 = vst [vmem:[#allocation8 + $0x10] sm:$0xff] %v2139
    %2272 = vst [vmem:[#allocation8 + $0x18] sm:$0xff] %v2156
    %2273 = vst [vmem:[#allocation8 + $0x20] sm:$0xff] %v2173
    %2274 = vst [vmem:[#allocation8 + $0x28] sm:$0xff] %v2190
    %2275 = vst [vmem:[#allocation8 + $0x30] sm:$0xff] %v2207
    %2276 = vst [vmem:[#allocation8 + $0x38] sm:$0xff] %v2224
    %2277 = vst [vmem:[#allocation8 + $0x40] sm:$0xff] %v2241
    %2278 = vst [vmem:[#allocation8 + $0x48] sm:$0xff] %v2258
    // Predicated region
    $region26: #{tpu_custom_call.1} parent=1 // pred_check
      _
    $region27: #{tpu_custom_call.1} parent=1 // pred_check_branch
      %2280 = sbr.rel (0) target = $region29
    $region28: #{tpu_custom_call.1} parent=1 // pred_region
      %s2282 = ssub.s32 1280, 1280
      %2283 = vsyncadd [#allocation4], %s2282
      %s2285 = sshll.u32 [#allocation8], 4
      %s2286 = int_to_ptr.vmem [resolvable:$true] %s2285
      %2288 = dma.vmem_to_hbm [thread:$0]  %s2286, 1280, %s3, [#allocation4]
    $region29: #{tpu_custom_call.1} parent=1 // pred_fallthru
      _
    // Predicated region
    $region30: #{tpu_custom_call.1} parent=1 // pred_check
      _
    $region31: #{tpu_custom_call.1} parent=1 // pred_check_branch
      %2290 = sbr.rel (0) target = $region33
    $region32: #{tpu_custom_call.1} parent=1 // pred_region
      %2291 = dma.done [#allocation4], 1280
    $region33: #{tpu_custom_call.1} parent=1 // pred_fallthru
      _
    %2292 = vsyncpa [#allocation3], 1
    %2293 = vsyncpa [#allocation6], 1
    %2294 = vsyncpa [#allocation4], 1

</llo_original>
